<compile_context>
chip_gen: v7x
topology: tpu7x:2x2x1
jax: 0.10.0
libtpu: 0.0.40
codegen_flags: <defaults>
</compile_context>

<pallas_src>
import jax
import jax.numpy as jnp
from jax.experimental import pallas as pl
from jax.experimental.pallas import tpu as pltpu


def _coord_att_kernel(x_ref, pw_ref, w1_ref, b1_ref, wh_ref, bh_ref,
                      w1bd_ref, b1bd_ref, wwbd_ref, bwbd_ref, tile_ref,
                      o_ref):
    # Shapes (C == OUP, M == mip):
    #   x_ref   : (nb, H, W*C)   lane-dense input block
    #   pw_ref  : (W*C, C)       width-pooling matrix (1/W folded in)
    #   w1_ref  : (C, M), b1_ref: (1, M)           conv1 (+BN folded), H branch
    #   wh_ref  : (M, C), bh_ref: (1, C)           conv_h
    #   w1bd_ref: (W*C, W*M), b1bd_ref: (1, W*M)   block-diag conv1, W branch (1/H folded)
    #   wwbd_ref: (W*M, W*C), bwbd_ref: (1, W*C)   block-diag conv_w
    #   tile_ref: (C, W*C)       spreads a_h across the W lane-groups
    #   o_ref   : (nb, H, W*C)   lane-dense output block
    nb, h, wc = x_ref.shape
    xf = x_ref[...].astype(jnp.float32)              # (nb, H, W*C)
    # Merge leading dims only (H is kept a multiple of 8 -> layout-preserving).
    xf2 = xf.reshape(nb * h, wc)

    # ---- H branch: pool over W via one MXU matmul, then conv1+BN+h_swish, conv_h.
    x_h = jnp.dot(xf2, pw_ref[...], preferred_element_type=jnp.float32)   # (nb*H, C)
    y_h = jnp.dot(x_h, w1_ref[...], preferred_element_type=jnp.float32) + b1_ref[...]
    y_h = y_h * jnp.clip(y_h + 3.0, 0.0, 6.0) * (1.0 / 6.0)               # h_swish
    a_h = jax.nn.sigmoid(
        jnp.dot(y_h, wh_ref[...], preferred_element_type=jnp.float32) + bh_ref[...])
    # Spread a_h over the W lane-groups so the final multiply stays lane-dense.
    a_h_flat = jnp.dot(a_h, tile_ref[...], preferred_element_type=jnp.float32)
    a_h_flat = a_h_flat.reshape(nb, h, wc)

    # ---- W branch: pool over H (sublane reduction, no relayout), block-diagonal
    # 1x1 convs keep the (w, c) structure flattened on the lane axis.
    x_wsum = jnp.sum(xf, axis=1)                      # (nb, W*C); 1/H folded into w1bd
    y_w = jnp.dot(x_wsum, w1bd_ref[...], preferred_element_type=jnp.float32) + b1bd_ref[...]
    y_w = y_w * jnp.clip(y_w + 3.0, 0.0, 6.0) * (1.0 / 6.0)
    a_w = jax.nn.sigmoid(
        jnp.dot(y_w, wwbd_ref[...], preferred_element_type=jnp.float32) + bwbd_ref[...])

    # ---- out = identity * a_w * a_h  (a_w broadcasts over H sublanes).
    out = xf * a_w[:, None, :] * a_h_flat
    o_ref[...] = out.astype(o_ref.dtype)


def coord_att_forward(x_nhwc, params, *, block_n=None):
    """CoordAtt forward as one fused pallas_call.

    x_nhwc: (N, H, W, C), any float dtype (bf16 recommended for streaming).
    params: (w1, b1, wh, bh, ww, bw); 1x1-conv weights laid out (in, out),
            BN1 (eval mode) already folded into (w1, b1).
    Returns (N, H, W, C) in x's dtype.
    """
    w1, b1, wh, bh, ww, bw = params
    n, h, w, c = x_nhwc.shape
    mip = w1.shape[1]
    oup = wh.shape[1]
    assert w1.shape[0] == c
    assert oup == c, "CoordAtt requires oup == inp (identity * a_w * a_h)"

    if block_n is None:
        # Batch several images per step, but keep >= 2 grid steps so both v7x
        # TensorCores (sharded over the parallel axis) are used when N >= 2.
        block_n = n if n < 2 else max(d for d in range(1, n // 2 + 1) if n % d == 0)
    assert n % block_n == 0

    f32 = jnp.float32
    # Constant folding done once on the host/XLA side (all tiny):
    pool_w = jnp.tile(jnp.eye(c, dtype=f32), (w, 1)) / w           # (W*C, C), 1/W folded
    tile_h = jnp.tile(jnp.eye(c, dtype=f32), (1, w))               # (C, W*C)
    w1_bd = jnp.kron(jnp.eye(w, dtype=f32), w1.astype(f32) / h)    # (W*C, W*MIP), 1/H folded
    b1_bd = jnp.tile(b1.astype(f32), w).reshape(1, w * mip)
    ww_bd = jnp.kron(jnp.eye(w, dtype=f32), ww.astype(f32))        # (W*MIP, W*OUP)
    bw_bd = jnp.tile(bw.astype(f32), w).reshape(1, w * oup)

    # Free contiguous relabel -> lane-dense (W*C on the lane axis) kernel I/O.
    x_flat = x_nhwc.reshape(n, h, w * c)

    def const(shape):
        return pl.BlockSpec(shape, lambda i: (0,) * len(shape))

    out_flat = pl.pallas_call(
        _coord_att_kernel,
        out_shape=jax.ShapeDtypeStruct((n, h, w * oup), x_nhwc.dtype),
        grid=(n // block_n,),
        in_specs=[
            pl.BlockSpec((block_n, h, w * c), lambda i: (i, 0, 0)),
            const((w * c, c)),
            const((c, mip)),
            const((1, mip)),
            const((mip, oup)),
            const((1, oup)),
            const((w * c, w * mip)),
            const((1, w * mip)),
            const((w * mip, w * oup)),
            const((1, w * oup)),
            const((oup, w * oup)),
        ],
        out_specs=pl.BlockSpec((block_n, h, w * oup), lambda i: (i, 0, 0)),
        compiler_params=pltpu.CompilerParams(
            dimension_semantics=("parallel",),
            vmem_limit_bytes=32 * 1024 * 1024,
        ),
    )(x_flat, pool_w, w1.astype(f32), b1.astype(f32).reshape(1, mip),
      wh.astype(f32), bh.astype(f32).reshape(1, oup),
      w1_bd, b1_bd, ww_bd, bw_bd, tile_h)
    return out_flat.reshape(n, h, w, oup)


def _fold_bn(key, c):
    # Deterministic eval-mode BatchNorm folded to per-channel scale/bias.
    k1, k2, k3, k4 = jax.random.split(key, 4)
    gamma = 1.0 + 0.1 * jax.random.normal(k1, (c,), jnp.float32)
    beta = 0.1 * jax.random.normal(k2, (c,), jnp.float32)
    mean = 0.1 * jax.random.normal(k3, (c,), jnp.float32)
    var = 0.5 + jnp.abs(jax.random.normal(k4, (c,), jnp.float32))
    scale = gamma * jax.lax.rsqrt(var + 1e-5)
    bias = beta - mean * scale
    return scale, bias


def _reference_forward(x_nhwc, params):
    # Pure-JAX reference with identical (folded) parameters, NHWC layout, f32.
    w1, b1, wh, bh, ww, bw = params
    n, h, w, c = x_nhwc.shape
    x_h = jnp.mean(x_nhwc, axis=2)                 # (N, H, C)  pool over width
    x_w = jnp.mean(x_nhwc, axis=1)                 # (N, W, C)  pool over height
    y0 = jnp.concatenate([x_h, x_w], axis=1)       # (N, H+W, C)
    y = y0 @ w1 + b1
    y = y * jnp.clip(y + 3.0, 0.0, 6.0) / 6.0
    yh, yw = y[:, :h], y[:, h:]
    a_h = jax.nn.sigmoid(yh @ wh + bh)             # (N, H, OUP)
    a_w = jax.nn.sigmoid(yw @ ww + bw)             # (N, W, OUP)
    return x_nhwc * a_w[:, None, :, :] * a_h[:, :, None, :]


if __name__ == "__main__":
    N, H, W = 4, 16, 16
    INP = 16                     # in channels
    OUP = 16                     # out channels (must equal INP: identity * a_w * a_h)
    REDUCTION = 32
    MIP = max(8, INP // REDUCTION)   # = 8

    key = jax.random.PRNGKey(0)
    kx, kw1, kb1c, kwh, kbh, kww, kbw, kbn = jax.random.split(key, 8)

    # Model kept NHWC end-to-end (no per-block NCHW<->NHWC transpose); streamed bf16.
    x_nhwc = jax.random.normal(kx, (N, H, W, INP), jnp.float32).astype(jnp.bfloat16)

    # conv1 (1x1, INP->MIP) with bias, then BN1 (eval mode) -> folded into w1/b1.
    w1_raw = 0.1 * jax.random.normal(kw1, (INP, MIP), jnp.float32)
    b1_conv = 0.1 * jax.random.normal(kb1c, (MIP,), jnp.float32)
    s1, b1_bn = _fold_bn(kbn, MIP)
    w1 = w1_raw * s1[None, :]
    b1 = b1_conv * s1 + b1_bn

    # conv_h / conv_w (1x1, MIP->OUP) with bias.
    wh = 0.1 * jax.random.normal(kwh, (MIP, OUP), jnp.float32)
    bh = 0.1 * jax.random.normal(kbh, (OUP,), jnp.float32)
    ww = 0.1 * jax.random.normal(kww, (MIP, OUP), jnp.float32)
    bw = 0.1 * jax.random.normal(kbw, (OUP,), jnp.float32)
    params = (w1, b1, wh, bh, ww, bw)

    out = coord_att_forward(x_nhwc, params)
    out = jax.block_until_ready(out)

    ref = _reference_forward(x_nhwc.astype(jnp.float32), params)
    err = float(jnp.max(jnp.abs(out.astype(jnp.float32) - ref)))
    assert out.shape == (N, H, W, OUP), out.shape
    assert err < 5e-2, f"max abs error vs reference: {err}"
    print("KERNEL_OK")
</pallas_src>

<mosaic_0001>
module attributes {stable_mosaic.version = 11 : i64} {
  func.func @_coord_att_kernel(%arg0: i32, %arg1: memref<2x16x256xbf16, #tpu.memory_space<vmem>>, %arg2: memref<256x16xf32, #tpu.memory_space<vmem>>, %arg3: memref<16x8xf32, #tpu.memory_space<vmem>>, %arg4: memref<1x8xf32, #tpu.memory_space<vmem>>, %arg5: memref<8x16xf32, #tpu.memory_space<vmem>>, %arg6: memref<1x16xf32, #tpu.memory_space<vmem>>, %arg7: memref<256x128xf32, #tpu.memory_space<vmem>>, %arg8: memref<1x128xf32, #tpu.memory_space<vmem>>, %arg9: memref<128x256xf32, #tpu.memory_space<vmem>>, %arg10: memref<1x256xf32, #tpu.memory_space<vmem>>, %arg11: memref<16x256xf32, #tpu.memory_space<vmem>>, %arg12: memref<2x16x256xbf16, #tpu.memory_space<vmem>>) attributes {dimension_semantics = [#tpu.dimension_semantics<parallel>], iteration_bounds = array<i64: 2>, scalar_prefetch = 0 : i64, scratch_operands = 0 : i64, tpu.core_type = #tpu.core_type<tc>, window_params = [{transform_indices = @transform_0, window_bounds = array<i64: 2, 16, 256>}, {pipeline_mode = #tpu.pipeline_mode<synchronous>, transform_indices = @transform_1, window_bounds = array<i64: 256, 16>}, {pipeline_mode = #tpu.pipeline_mode<synchronous>, transform_indices = @transform_2, window_bounds = array<i64: 16, 8>}, {pipeline_mode = #tpu.pipeline_mode<synchronous>, transform_indices = @transform_3, window_bounds = array<i64: 1, 8>}, {pipeline_mode = #tpu.pipeline_mode<synchronous>, transform_indices = @transform_4, window_bounds = array<i64: 8, 16>}, {pipeline_mode = #tpu.pipeline_mode<synchronous>, transform_indices = @transform_5, window_bounds = array<i64: 1, 16>}, {pipeline_mode = #tpu.pipeline_mode<synchronous>, transform_indices = @transform_6, window_bounds = array<i64: 256, 128>}, {pipeline_mode = #tpu.pipeline_mode<synchronous>, transform_indices = @transform_7, window_bounds = array<i64: 1, 128>}, {pipeline_mode = #tpu.pipeline_mode<synchronous>, transform_indices = @transform_8, window_bounds = array<i64: 128, 256>}, {pipeline_mode = #tpu.pipeline_mode<synchronous>, transform_indices = @transform_9, window_bounds = array<i64: 1, 256>}, {pipeline_mode = #tpu.pipeline_mode<synchronous>, transform_indices = @transform_10, window_bounds = array<i64: 16, 256>}, {transform_indices = @transform_11, window_bounds = array<i64: 2, 16, 256>}]} {
    %c0 = arith.constant 0 : index
    %c0_0 = arith.constant 0 : index
    %c0_1 = arith.constant 0 : index
    %0 = vector.load %arg1[%c0, %c0_0, %c0_1] : memref<2x16x256xbf16, #tpu.memory_space<vmem>>, vector<2x16x256xbf16>
    %1 = arith.extf %0 : vector<2x16x256xbf16> to vector<2x16x256xf32>
    %2 = vector.shape_cast %1 : vector<2x16x256xf32> to vector<32x256xf32>
    %c0_2 = arith.constant 0 : index
    %c0_3 = arith.constant 0 : index
    %3 = vector.load %arg2[%c0_2, %c0_3] : memref<256x16xf32, #tpu.memory_space<vmem>>, vector<256x16xf32>
    %cst = arith.constant dense<0.000000e+00> : vector<32x16xf32>
    %4 = tpu.matmul %2, %3, %cst {dimension_numbers = #tpu.dot_dimension_numbers<[1], [0], [0], [1], [0, 0, 1, 1], [], []>} : vector<32x256xf32>, vector<256x16xf32>, vector<32x16xf32> -> vector<32x16xf32>
    %c0_4 = arith.constant 0 : index
    %c0_5 = arith.constant 0 : index
    %5 = vector.load %arg3[%c0_4, %c0_5] : memref<16x8xf32, #tpu.memory_space<vmem>>, vector<16x8xf32>
    %cst_6 = arith.constant dense<0.000000e+00> : vector<32x8xf32>
    %6 = tpu.matmul %4, %5, %cst_6 {dimension_numbers = #tpu.dot_dimension_numbers<[1], [0], [0], [1], [0, 0, 1, 1], [], []>} : vector<32x16xf32>, vector<16x8xf32>, vector<32x8xf32> -> vector<32x8xf32>
    %c0_7 = arith.constant 0 : index
    %c0_8 = arith.constant 0 : index
    %7 = vector.load %arg4[%c0_7, %c0_8] : memref<1x8xf32, #tpu.memory_space<vmem>>, vector<1x8xf32>
    %8 = vector.broadcast %7 : vector<1x8xf32> to vector<32x8xf32>
    %9 = arith.addf %6, %8 : vector<32x8xf32>
    %cst_9 = arith.constant 3.000000e+00 : f32
    %10 = vector.broadcast %cst_9 : f32 to vector<32x8xf32>
    %11 = arith.addf %9, %10 : vector<32x8xf32>
    %cst_10 = arith.constant 0.000000e+00 : f32
    %cst_11 = arith.constant 6.000000e+00 : f32
    %12 = vector.broadcast %cst_10 : f32 to vector<32x8xf32>
    %13 = arith.maximumf %12, %11 : vector<32x8xf32>
    %14 = vector.broadcast %cst_11 : f32 to vector<32x8xf32>
    %15 = arith.minimumf %14, %13 : vector<32x8xf32>
    %16 = arith.mulf %9, %15 : vector<32x8xf32>
    %cst_12 = arith.constant 0.166666672 : f32
    %17 = vector.broadcast %cst_12 : f32 to vector<32x8xf32>
    %18 = arith.mulf %16, %17 : vector<32x8xf32>
    %c0_13 = arith.constant 0 : index
    %c0_14 = arith.constant 0 : index
    %19 = vector.load %arg5[%c0_13, %c0_14] : memref<8x16xf32, #tpu.memory_space<vmem>>, vector<8x16xf32>
    %cst_15 = arith.constant dense<0.000000e+00> : vector<32x16xf32>
    %20 = tpu.matmul %18, %19, %cst_15 {dimension_numbers = #tpu.dot_dimension_numbers<[1], [0], [0], [1], [0, 0, 1, 1], [], []>} : vector<32x8xf32>, vector<8x16xf32>, vector<32x16xf32> -> vector<32x16xf32>
    %c0_16 = arith.constant 0 : index
    %c0_17 = arith.constant 0 : index
    %21 = vector.load %arg6[%c0_16, %c0_17] : memref<1x16xf32, #tpu.memory_space<vmem>>, vector<1x16xf32>
    %22 = vector.broadcast %21 : vector<1x16xf32> to vector<32x16xf32>
    %23 = arith.addf %20, %22 : vector<32x16xf32>
    %24 = arith.negf %23 : vector<32x16xf32>
    %25 = math.exp %24 : vector<32x16xf32>
    %cst_18 = arith.constant 1.000000e+00 : f32
    %26 = vector.broadcast %cst_18 : f32 to vector<32x16xf32>
    %27 = arith.addf %26, %25 : vector<32x16xf32>
    %28 = arith.divf %26, %27 : vector<32x16xf32>
    %c0_19 = arith.constant 0 : index
    %c0_20 = arith.constant 0 : index
    %29 = vector.load %arg11[%c0_19, %c0_20] : memref<16x256xf32, #tpu.memory_space<vmem>>, vector<16x256xf32>
    %cst_21 = arith.constant dense<0.000000e+00> : vector<32x256xf32>
    %30 = tpu.matmul %28, %29, %cst_21 {dimension_numbers = #tpu.dot_dimension_numbers<[1], [0], [0], [1], [0, 0, 1, 1], [], []>} : vector<32x16xf32>, vector<16x256xf32>, vector<32x256xf32> -> vector<32x256xf32>
    %31 = vector.shape_cast %30 : vector<32x256xf32> to vector<2x16x256xf32>
    %cst_22 = arith.constant dense<0.000000e+00> : vector<2x256xf32>
    %32 = vector.multi_reduction <add>, %1, %cst_22 [1] : vector<2x16x256xf32> to vector<2x256xf32>
    %c0_23 = arith.constant 0 : index
    %c0_24 = arith.constant 0 : index
    %33 = vector.load %arg7[%c0_23, %c0_24] : memref<256x128xf32, #tpu.memory_space<vmem>>, vector<256x128xf32>
    %cst_25 = arith.constant dense<0.000000e+00> : vector<2x128xf32>
    %34 = tpu.matmul %32, %33, %cst_25 {dimension_numbers = #tpu.dot_dimension_numbers<[1], [0], [0], [1], [0, 0, 1, 1], [], []>} : vector<2x256xf32>, vector<256x128xf32>, vector<2x128xf32> -> vector<2x128xf32>
    %c0_26 = arith.constant 0 : index
    %c0_27 = arith.constant 0 : index
    %35 = vector.load %arg8[%c0_26, %c0_27] : memref<1x128xf32, #tpu.memory_space<vmem>>, vector<1x128xf32>
    %36 = vector.broadcast %35 : vector<1x128xf32> to vector<2x128xf32>
    %37 = arith.addf %34, %36 : vector<2x128xf32>
    %cst_28 = arith.constant 3.000000e+00 : f32
    %38 = vector.broadcast %cst_28 : f32 to vector<2x128xf32>
    %39 = arith.addf %37, %38 : vector<2x128xf32>
    %cst_29 = arith.constant 0.000000e+00 : f32
    %cst_30 = arith.constant 6.000000e+00 : f32
    %40 = vector.broadcast %cst_29 : f32 to vector<2x128xf32>
    %41 = arith.maximumf %40, %39 : vector<2x128xf32>
    %42 = vector.broadcast %cst_30 : f32 to vector<2x128xf32>
    %43 = arith.minimumf %42, %41 : vector<2x128xf32>
    %44 = arith.mulf %37, %43 : vector<2x128xf32>
    %cst_31 = arith.constant 0.166666672 : f32
    %45 = vector.broadcast %cst_31 : f32 to vector<2x128xf32>
    %46 = arith.mulf %44, %45 : vector<2x128xf32>
    %c0_32 = arith.constant 0 : index
    %c0_33 = arith.constant 0 : index
    %47 = vector.load %arg9[%c0_32, %c0_33] : memref<128x256xf32, #tpu.memory_space<vmem>>, vector<128x256xf32>
    %cst_34 = arith.constant dense<0.000000e+00> : vector<2x256xf32>
    %48 = tpu.matmul %46, %47, %cst_34 {dimension_numbers = #tpu.dot_dimension_numbers<[1], [0], [0], [1], [0, 0, 1, 1], [], []>} : vector<2x128xf32>, vector<128x256xf32>, vector<2x256xf32> -> vector<2x256xf32>
    %c0_35 = arith.constant 0 : index
    %c0_36 = arith.constant 0 : index
    %49 = vector.load %arg10[%c0_35, %c0_36] : memref<1x256xf32, #tpu.memory_space<vmem>>, vector<1x256xf32>
    %50 = vector.broadcast %49 : vector<1x256xf32> to vector<2x256xf32>
    %51 = arith.addf %48, %50 : vector<2x256xf32>
    %52 = arith.negf %51 : vector<2x256xf32>
    %53 = math.exp %52 : vector<2x256xf32>
    %cst_37 = arith.constant 1.000000e+00 : f32
    %54 = vector.broadcast %cst_37 : f32 to vector<2x256xf32>
    %55 = arith.addf %54, %53 : vector<2x256xf32>
    %56 = arith.divf %54, %55 : vector<2x256xf32>
    %57 = vector.shape_cast %56 : vector<2x256xf32> to vector<2x1x256xf32>
    %58 = vector.broadcast %57 : vector<2x1x256xf32> to vector<2x16x256xf32>
    %59 = arith.mulf %1, %58 : vector<2x16x256xf32>
    %60 = arith.mulf %59, %31 : vector<2x16x256xf32>
    %61 = arith.truncf %60 : vector<2x16x256xf32> to vector<2x16x256xbf16>
    %c0_38 = arith.constant 0 : index
    %c0_39 = arith.constant 0 : index
    %c0_40 = arith.constant 0 : index
    %62 = vector.load %arg12[%c0_38, %c0_39, %c0_40] : memref<2x16x256xbf16, #tpu.memory_space<vmem>>, vector<2x16x256xbf16>
    tpu.vector_store %arg12[%c0_38, %c0_39, %c0_40], %61 {strides = array<i32>} : memref<2x16x256xbf16, #tpu.memory_space<vmem>>, vector<2x16x256xbf16>,
    return
  }
  func.func @transform_0(%arg0: i32) -> (i32, i32, i32) {
    %c0_i32 = arith.constant 0 : i32
    %c0_i32_0 = arith.constant 0 : i32
    %c0_i32_1 = arith.constant 0 : i32
    return %arg0, %c0_i32, %c0_i32_0 : i32, i32, i32
  }
  func.func @transform_1(%arg0: i32) -> (i32, i32) {
    %c0_i32 = arith.constant 0 : i32
    %c0_i32_0 = arith.constant 0 : i32
    %c0_i32_1 = arith.constant 0 : i32
    return %c0_i32, %c0_i32_0 : i32, i32
  }
  func.func @transform_2(%arg0: i32) -> (i32, i32) {
    %c0_i32 = arith.constant 0 : i32
    %c0_i32_0 = arith.constant 0 : i32
    %c0_i32_1 = arith.constant 0 : i32
    return %c0_i32, %c0_i32_0 : i32, i32
  }
  func.func @transform_3(%arg0: i32) -> (i32, i32) {
    %c0_i32 = arith.constant 0 : i32
    %c0_i32_0 = arith.constant 0 : i32
    %c0_i32_1 = arith.constant 0 : i32
    return %c0_i32, %c0_i32_0 : i32, i32
  }
  func.func @transform_4(%arg0: i32) -> (i32, i32) {
    %c0_i32 = arith.constant 0 : i32
    %c0_i32_0 = arith.constant 0 : i32
    %c0_i32_1 = arith.constant 0 : i32
    return %c0_i32, %c0_i32_0 : i32, i32
  }
  func.func @transform_5(%arg0: i32) -> (i32, i32) {
    %c0_i32 = arith.constant 0 : i32
    %c0_i32_0 = arith.constant 0 : i32
    %c0_i32_1 = arith.constant 0 : i32
    return %c0_i32, %c0_i32_0 : i32, i32
  }
  func.func @transform_6(%arg0: i32) -> (i32, i32) {
    %c0_i32 = arith.constant 0 : i32
    %c0_i32_0 = arith.constant 0 : i32
    %c0_i32_1 = arith.constant 0 : i32
    return %c0_i32, %c0_i32_0 : i32, i32
  }
  func.func @transform_7(%arg0: i32) -> (i32, i32) {
    %c0_i32 = arith.constant 0 : i32
    %c0_i32_0 = arith.constant 0 : i32
    %c0_i32_1 = arith.constant 0 : i32
    return %c0_i32, %c0_i32_0 : i32, i32
  }
  func.func @transform_8(%arg0: i32) -> (i32, i32) {
    %c0_i32 = arith.constant 0 : i32
    %c0_i32_0 = arith.constant 0 : i32
    %c0_i32_1 = arith.constant 0 : i32
    return %c0_i32, %c0_i32_0 : i32, i32
  }
  func.func @transform_9(%arg0: i32) -> (i32, i32) {
    %c0_i32 = arith.constant 0 : i32
    %c0_i32_0 = arith.constant 0 : i32
    %c0_i32_1 = arith.constant 0 : i32
    return %c0_i32, %c0_i32_0 : i32, i32
  }
  func.func @transform_10(%arg0: i32) -> (i32, i32) {
    %c0_i32 = arith.constant 0 : i32
    %c0_i32_0 = arith.constant 0 : i32
    %c0_i32_1 = arith.constant 0 : i32
    return %c0_i32, %c0_i32_0 : i32, i32
  }
  func.func @transform_11(%arg0: i32) -> (i32, i32, i32) {
    %c0_i32 = arith.constant 0 : i32
    %c0_i32_0 = arith.constant 0 : i32
    %c0_i32_1 = arith.constant 0 : i32
    return %arg0, %c0_i32, %c0_i32_0 : i32, i32, i32
  }
}

</mosaic_0001>

<llo_original>
// kernel: tpu_custom_call.1
$region0: #{tpu_custom_call.1}
  #allocation0 [shape = 'u32[]', space=smem, size = 0x4, offset = 0x4, fixed_abs, tag = 'smem constant byte address 0x4 - core index']
  #allocation1 [shape = 'u32[144,128]{1,0:T(1,128)}', space=vmem, size = 0x12000, scoped, tag = 'internal scratch']
  %s0 = inlined_call_operand.vmem [shape: bf16[4,16,256], index: 0, kind: input, shape index: {}]
  %s1 = inlined_call_operand.vmem [shape: f32[256,16], index: 1, kind: input, shape index: {}]
  %s2 = inlined_call_operand.vmem [shape: f32[16,8], index: 2, kind: input, shape index: {}]
  %s3 = inlined_call_operand.vmem [shape: f32[1,8], index: 3, kind: input, shape index: {}]
  %s4 = inlined_call_operand.vmem [shape: f32[8,16], index: 4, kind: input, shape index: {}]
  %s5 = inlined_call_operand.vmem [shape: f32[1,16], index: 5, kind: input, shape index: {}]
  %s6 = inlined_call_operand.vmem [shape: f32[256,128], index: 6, kind: input, shape index: {}]
  %s7 = inlined_call_operand.vmem [shape: f32[1,128], index: 7, kind: input, shape index: {}]
  %s8 = inlined_call_operand.hbm [shape: f32[128,256], index: 8, kind: input, shape index: {}]
  %s9 = inlined_call_operand.vmem [shape: f32[1,256], index: 9, kind: input, shape index: {}]
  %s10 = inlined_call_operand.hbm [shape: f32[16,256], index: 10, kind: input, shape index: {}]
  %s11 = inlined_call_operand.hbm [shape: bf16[4,16,256], index: 11, kind: output, shape index: {}]
  %s12 = sld [smem:[#allocation0]]
  $region85: #{tpu_custom_call.1} parent=0
    _
  %s14 = ssub.s32 1, %s12
  %s15 = scalar_select 0, %s14, %s12
  $region1: #{tpu_custom_call.1} parent=0
    #allocation2 [shape = 'u8[131072]{0}', space=vmem, size = 0x20000, scoped, tag = 'input window, operand 8, single buffered']
    #allocation3 [shape = 's32[2]{0}', space=sflag, size = 0x8, scoped, tag = 'scoped memory for tpu_custom_call.1']
    #allocation4 [shape = 's32[2]{0}', space=sflag, size = 0x8, scoped, tag = 'scoped memory for tpu_custom_call.1']
    #allocation5 [shape = 'u8[16384]{0}', space=vmem, size = 0x4000, scoped, tag = 'input window, operand 10, single buffered']
    #allocation6 [shape = 's32[1]{0}', space=sflag, size = 0x4, scoped, tag = 'scoped memory for tpu_custom_call.1']
    #allocation7 [shape = 'u8[32768]{0}', space=vmem, size = 0x8000, scoped, tag = 'output window, operand 0']
    %16 = vsyncpa [#allocation3], 0
    %17 = vsyncpa [#allocation6], 0
    %18 = vsyncpa [#allocation4], 0
    %s19 = scalar_lea.sflag [#allocation4], 1
    %20 = vsyncpa %s19, 0
    loop: start=0, step=1, limit=4
    $region2: #{tpu_custom_call.1} parent=1 // loop_pre_header
      _
    $region3: #{tpu_custom_call.1} parent=1 // loop_header
      %s22 = sphi 0, %s26
      %p23 = scmp.ge.s32.totalorder %s22, 4
      %s32 = sphi 0, %s34
      %s35 = sphi 0, %s32
      %s36 = sphi 0, %s35
      %s52 = sphi 0, %s36
      %s56 = sphi 0, %s56
      %s58 = sphi 0, %s56
      %s59 = sphi 0, %s58
      %s73 = sphi 0, %s59
      %s77 = sphi 0, %s77
      %s79 = sphi 0, %s77
      %s80 = sphi 0, %s79
      %s94 = sphi 0, %s80
      %s98 = sphi 0, %s98
      %s100 = sphi 0, %s98
      %s101 = sphi 0, %s100
      %s115 = sphi 0, %s101
      %s119 = sphi 0, %s119
      %s121 = sphi 0, %s119
      %s122 = sphi 0, %s121
      %s136 = sphi 0, %s122
      %s140 = sphi 0, %s140
      %s142 = sphi 0, %s140
      %s143 = sphi 0, %s142
      %s157 = sphi 0, %s143
      %s161 = sphi 0, %s161
      %s163 = sphi 0, %s161
      %s164 = sphi 0, %s163
      %s178 = sphi 0, %s164
      %s182 = sphi 0, %s182
      %s184 = sphi 0, %s182
      %s185 = sphi 0, %s184
      %s199 = sphi 0, %s185
      %s203 = sphi 0, %s203
      %s205 = sphi 0, %s203
      %s206 = sphi 0, %s205
      %s220 = sphi 0, %s206
      %s224 = sphi 0, %s224
      %s226 = sphi 0, %s224
      %s227 = sphi 0, %s226
      %s241 = sphi 0, %s227
      %s245 = sphi 0, %s245
      %s247 = sphi 0, %s245
      %s248 = sphi 0, %s247
      %s262 = sphi 0, %s248
      %s268 = sphi 0, %s270
      %s271 = sphi 0, %s268
      %s272 = sphi 0, %s271
      %s288 = sphi 0, %s272
    $region4: #{tpu_custom_call.1} parent=1 // loop_header_branch
      %25 = sbr.rel (%p23) target = $region8
    $region5: #{tpu_custom_call.1} parent=1 // loop_body
      %s27 = ssub.s32 %s22, 1
      %s28 = ssub.s32 %s22, 2
      %s29 = sadd.s32 %s22, 1
      %s30 = ssub.s32 %s22, %s29
      %p31 = scmp.eq.s32.totalorder %s30, 0
      %s33 = sadd.s32 %s32, 1
      %s34 = scalar_select %p31, %s32, %s33
      %p37 = pneg %p31
      %p38 = scmp.eq.s32.totalorder %s22, 1
      %p39 = por %p37, %p38
      %p40 = scmp.ne.s32.totalorder %s32, %s35
      %p41 = scmp.eq.s32.totalorder %s22, 0
      %p42 = por %p40, %p41
      %p43 = scmp.ne.s32.totalorder %s32, %s35
      %p44 = scmp.eq.s32.totalorder %s27, 1
      %p45 = por %p43, %p44
      %p46 = scmp.ne.s32.totalorder %s35, %s36
      %p47 = scmp.eq.s32.totalorder %s27, 0
      %p48 = por %p46, %p47
      %p49 = scmp.ne.s32.totalorder %s35, %s36
      %p50 = scmp.eq.s32.totalorder %s28, 1
      %p51 = por %p49, %p50
      %p53 = scmp.ne.s32.totalorder %s36, %s52
      %p54 = scmp.eq.s32.totalorder %s28, 0
      %p55 = por %p53, %p54
      %s57 = sadd.s32 %s56, 1
      %p60 = scmp.eq.s32.totalorder %s22, 1
      %p61 = scmp.ne.s32.totalorder %s56, %s58
      %p62 = scmp.eq.s32.totalorder %s22, 0
      %p63 = por %p61, %p62
      %p64 = scmp.ne.s32.totalorder %s56, %s58
      %p65 = scmp.eq.s32.totalorder %s27, 1
      %p66 = por %p64, %p65
      %p67 = scmp.ne.s32.totalorder %s58, %s59
      %p68 = scmp.eq.s32.totalorder %s27, 0
      %p69 = por %p67, %p68
      %p70 = scmp.ne.s32.totalorder %s58, %s59
      %p71 = scmp.eq.s32.totalorder %s28, 1
      %p72 = por %p70, %p71
      %p74 = scmp.ne.s32.totalorder %s59, %s73
      %p75 = scmp.eq.s32.totalorder %s28, 0
      %p76 = por %p74, %p75
      %s78 = sadd.s32 %s77, 1
      %p81 = scmp.eq.s32.totalorder %s22, 1
      %p82 = scmp.ne.s32.totalorder %s77, %s79
      %p83 = scmp.eq.s32.totalorder %s22, 0
      %p84 = por %p82, %p83
      %p85 = scmp.ne.s32.totalorder %s77, %s79
      %p86 = scmp.eq.s32.totalorder %s27, 1
      %p87 = por %p85, %p86
      %p88 = scmp.ne.s32.totalorder %s79, %s80
      %p89 = scmp.eq.s32.totalorder %s27, 0
      %p90 = por %p88, %p89
      %p91 = scmp.ne.s32.totalorder %s79, %s80
      %p92 = scmp.eq.s32.totalorder %s28, 1
      %p93 = por %p91, %p92
      %p95 = scmp.ne.s32.totalorder %s80, %s94
      %p96 = scmp.eq.s32.totalorder %s28, 0
      %p97 = por %p95, %p96
      %s99 = sadd.s32 %s98, 1
      %p102 = scmp.eq.s32.totalorder %s22, 1
      %p103 = scmp.ne.s32.totalorder %s98, %s100
      %p104 = scmp.eq.s32.totalorder %s22, 0
      %p105 = por %p103, %p104
      %p106 = scmp.ne.s32.totalorder %s98, %s100
      %p107 = scmp.eq.s32.totalorder %s27, 1
      %p108 = por %p106, %p107
      %p109 = scmp.ne.s32.totalorder %s100, %s101
      %p110 = scmp.eq.s32.totalorder %s27, 0
      %p111 = por %p109, %p110
      %p112 = scmp.ne.s32.totalorder %s100, %s101
      %p113 = scmp.eq.s32.totalorder %s28, 1
      %p114 = por %p112, %p113
      %p116 = scmp.ne.s32.totalorder %s101, %s115
      %p117 = scmp.eq.s32.totalorder %s28, 0
      %p118 = por %p116, %p117
      %s120 = sadd.s32 %s119, 1
      %p123 = scmp.eq.s32.totalorder %s22, 1
      %p124 = scmp.ne.s32.totalorder %s119, %s121
      %p125 = scmp.eq.s32.totalorder %s22, 0
      %p126 = por %p124, %p125
      %p127 = scmp.ne.s32.totalorder %s119, %s121
      %p128 = scmp.eq.s32.totalorder %s27, 1
      %p129 = por %p127, %p128
      %p130 = scmp.ne.s32.totalorder %s121, %s122
      %p131 = scmp.eq.s32.totalorder %s27, 0
      %p132 = por %p130, %p131
      %p133 = scmp.ne.s32.totalorder %s121, %s122
      %p134 = scmp.eq.s32.totalorder %s28, 1
      %p135 = por %p133, %p134
      %p137 = scmp.ne.s32.totalorder %s122, %s136
      %p138 = scmp.eq.s32.totalorder %s28, 0
      %p139 = por %p137, %p138
      %s141 = sadd.s32 %s140, 1
      %p144 = scmp.eq.s32.totalorder %s22, 1
      %p145 = scmp.ne.s32.totalorder %s140, %s142
      %p146 = scmp.eq.s32.totalorder %s22, 0
      %p147 = por %p145, %p146
      %p148 = scmp.ne.s32.totalorder %s140, %s142
      %p149 = scmp.eq.s32.totalorder %s27, 1
      %p150 = por %p148, %p149
      %p151 = scmp.ne.s32.totalorder %s142, %s143
      %p152 = scmp.eq.s32.totalorder %s27, 0
      %p153 = por %p151, %p152
      %p154 = scmp.ne.s32.totalorder %s142, %s143
      %p155 = scmp.eq.s32.totalorder %s28, 1
      %p156 = por %p154, %p155
      %p158 = scmp.ne.s32.totalorder %s143, %s157
      %p159 = scmp.eq.s32.totalorder %s28, 0
      %p160 = por %p158, %p159
      %s162 = sadd.s32 %s161, 1
      %p165 = scmp.eq.s32.totalorder %s22, 1
      %p166 = scmp.ne.s32.totalorder %s161, %s163
      %p167 = scmp.eq.s32.totalorder %s22, 0
      %p168 = por %p166, %p167
      %p169 = scmp.ne.s32.totalorder %s161, %s163
      %p170 = scmp.eq.s32.totalorder %s27, 1
      %p171 = por %p169, %p170
      %p172 = scmp.ne.s32.totalorder %s163, %s164
      %p173 = scmp.eq.s32.totalorder %s27, 0
      %p174 = por %p172, %p173
      %p175 = scmp.ne.s32.totalorder %s163, %s164
      %p176 = scmp.eq.s32.totalorder %s28, 1
      %p177 = por %p175, %p176
      %p179 = scmp.ne.s32.totalorder %s164, %s178
      %p180 = scmp.eq.s32.totalorder %s28, 0
      %p181 = por %p179, %p180
      %s183 = sadd.s32 %s182, 1
      %p186 = scmp.eq.s32.totalorder %s22, 1
      %p187 = scmp.ne.s32.totalorder %s182, %s184
      %p188 = scmp.eq.s32.totalorder %s22, 0
      %p189 = por %p187, %p188
      %p190 = scmp.ne.s32.totalorder %s182, %s184
      %p191 = scmp.eq.s32.totalorder %s27, 1
      %p192 = por %p190, %p191
      %p193 = scmp.ne.s32.totalorder %s184, %s185
      %p194 = scmp.eq.s32.totalorder %s27, 0
      %p195 = por %p193, %p194
      %p196 = scmp.ne.s32.totalorder %s184, %s185
      %p197 = scmp.eq.s32.totalorder %s28, 1
      %p198 = por %p196, %p197
      %p200 = scmp.ne.s32.totalorder %s185, %s199
      %p201 = scmp.eq.s32.totalorder %s28, 0
      %p202 = por %p200, %p201
      %s204 = sadd.s32 %s203, 1
      %p207 = scmp.eq.s32.totalorder %s22, 1
      %p208 = scmp.ne.s32.totalorder %s203, %s205
      %p209 = scmp.eq.s32.totalorder %s22, 0
      %p210 = por %p208, %p209
      %p211 = scmp.ne.s32.totalorder %s203, %s205
      %p212 = scmp.eq.s32.totalorder %s27, 1
      %p213 = por %p211, %p212
      %p214 = scmp.ne.s32.totalorder %s205, %s206
      %p215 = scmp.eq.s32.totalorder %s27, 0
      %p216 = por %p214, %p215
      %p217 = scmp.ne.s32.totalorder %s205, %s206
      %p218 = scmp.eq.s32.totalorder %s28, 1
      %p219 = por %p217, %p218
      %p221 = scmp.ne.s32.totalorder %s206, %s220
      %p222 = scmp.eq.s32.totalorder %s28, 0
      %p223 = por %p221, %p222
      %s225 = sadd.s32 %s224, 1
      %p228 = scmp.eq.s32.totalorder %s22, 1
      %p229 = scmp.ne.s32.totalorder %s224, %s226
      %p230 = scmp.eq.s32.totalorder %s22, 0
      %p231 = por %p229, %p230
      %p232 = scmp.ne.s32.totalorder %s224, %s226
      %p233 = scmp.eq.s32.totalorder %s27, 1
      %p234 = por %p232, %p233
      %p235 = scmp.ne.s32.totalorder %s226, %s227
      %p236 = scmp.eq.s32.totalorder %s27, 0
      %p237 = por %p235, %p236
      %p238 = scmp.ne.s32.totalorder %s226, %s227
      %p239 = scmp.eq.s32.totalorder %s28, 1
      %p240 = por %p238, %p239
      %p242 = scmp.ne.s32.totalorder %s227, %s241
      %p243 = scmp.eq.s32.totalorder %s28, 0
      %p244 = por %p242, %p243
      %s246 = sadd.s32 %s245, 1
      %p249 = scmp.eq.s32.totalorder %s22, 1
      %p250 = scmp.ne.s32.totalorder %s245, %s247
      %p251 = scmp.eq.s32.totalorder %s22, 0
      %p252 = por %p250, %p251
      %p253 = scmp.ne.s32.totalorder %s245, %s247
      %p254 = scmp.eq.s32.totalorder %s27, 1
      %p255 = por %p253, %p254
      %p256 = scmp.ne.s32.totalorder %s247, %s248
      %p257 = scmp.eq.s32.totalorder %s27, 0
      %p258 = por %p256, %p257
      %p259 = scmp.ne.s32.totalorder %s247, %s248
      %p260 = scmp.eq.s32.totalorder %s28, 1
      %p261 = por %p259, %p260
      %p263 = scmp.ne.s32.totalorder %s248, %s262
      %p264 = scmp.eq.s32.totalorder %s28, 0
      %p265 = por %p263, %p264
      %s266 = ssub.s32 %s22, %s29
      %p267 = scmp.eq.s32.totalorder %s266, 0
      %s269 = sadd.s32 %s268, 1
      %s270 = scalar_select %p267, %s268, %s269
      %p273 = pneg %p267
      %p274 = scmp.eq.s32.totalorder %s22, 1
      %p275 = por %p273, %p274
      %p276 = scmp.ne.s32.totalorder %s268, %s271
      %p277 = scmp.eq.s32.totalorder %s22, 0
      %p278 = por %p276, %p277
      %p279 = scmp.ne.s32.totalorder %s268, %s271
      %p280 = scmp.eq.s32.totalorder %s27, 1
      %p281 = por %p279, %p280
      %p282 = scmp.ne.s32.totalorder %s271, %s272
      %p283 = scmp.eq.s32.totalorder %s27, 0
      %p284 = por %p282, %p283
      %p285 = scmp.ne.s32.totalorder %s271, %s272
      %p286 = scmp.eq.s32.totalorder %s28, 1
      %p287 = por %p285, %p286
      %p289 = scmp.ne.s32.totalorder %s272, %s288
      %p290 = scmp.eq.s32.totalorder %s28, 0
      %p291 = por %p289, %p290
      %p292 = scmp.le.s32.totalorder 1, %s22
      %p293 = scmp.lt.s32.totalorder %s22, 3
      %p294 = pnand %p292, %p293
      %p295 = pneg %p294
      // Predicated region
      $region9: #{tpu_custom_call.1} parent=5 // pred_check
        _
      $region10: #{tpu_custom_call.1} parent=5 // pred_check_branch
        %297 = sbr.rel (%p294) target = $region12
      $region11: #{tpu_custom_call.1} parent=5 // pred_region
        %s298 = ssub.s32 %s22, 1
        // Predicated region
        $region13: #{tpu_custom_call.1} parent=11 // pred_check
          %p299 = pneg %p69
        $region14: #{tpu_custom_call.1} parent=11 // pred_check_branch
          %301 = sbr.rel (%p299) target = $region16
        $region15: #{tpu_custom_call.1} parent=11 // pred_region
          _
        $region16: #{tpu_custom_call.1} parent=11 // pred_fallthru
          _
        // Predicated region
        $region17: #{tpu_custom_call.1} parent=11 // pred_check
          %p302 = pneg %p90
        $region18: #{tpu_custom_call.1} parent=11 // pred_check_branch
          %304 = sbr.rel (%p302) target = $region20
        $region19: #{tpu_custom_call.1} parent=11 // pred_region
          _
        $region20: #{tpu_custom_call.1} parent=11 // pred_fallthru
          _
        // Predicated region
        $region21: #{tpu_custom_call.1} parent=11 // pred_check
          %p305 = pneg %p111
        $region22: #{tpu_custom_call.1} parent=11 // pred_check_branch
          %307 = sbr.rel (%p305) target = $region24
        $region23: #{tpu_custom_call.1} parent=11 // pred_region
          _
        $region24: #{tpu_custom_call.1} parent=11 // pred_fallthru
          _
        // Predicated region
        $region25: #{tpu_custom_call.1} parent=11 // pred_check
          %p308 = pneg %p132
        $region26: #{tpu_custom_call.1} parent=11 // pred_check_branch
          %310 = sbr.rel (%p308) target = $region28
        $region27: #{tpu_custom_call.1} parent=11 // pred_region
          _
        $region28: #{tpu_custom_call.1} parent=11 // pred_fallthru
          _
        // Predicated region
        $region29: #{tpu_custom_call.1} parent=11 // pred_check
          %p311 = pneg %p153
        $region30: #{tpu_custom_call.1} parent=11 // pred_check_branch
          %313 = sbr.rel (%p311) target = $region32
        $region31: #{tpu_custom_call.1} parent=11 // pred_region
          _
        $region32: #{tpu_custom_call.1} parent=11 // pred_fallthru
          _
        // Predicated region
        $region33: #{tpu_custom_call.1} parent=11 // pred_check
          %p314 = pneg %p174
        $region34: #{tpu_custom_call.1} parent=11 // pred_check_branch
          %316 = sbr.rel (%p314) target = $region36
        $region35: #{tpu_custom_call.1} parent=11 // pred_region
          _
        $region36: #{tpu_custom_call.1} parent=11 // pred_fallthru
          _
        // Predicated region
        $region37: #{tpu_custom_call.1} parent=11 // pred_check
          %p317 = pneg %p195
        $region38: #{tpu_custom_call.1} parent=11 // pred_check_branch
          %319 = sbr.rel (%p317) target = $region40
        $region39: #{tpu_custom_call.1} parent=11 // pred_region
          _
        $region40: #{tpu_custom_call.1} parent=11 // pred_fallthru
          _
        // Predicated region
        $region41: #{tpu_custom_call.1} parent=11 // pred_check
          %p320 = pneg %p216
        $region42: #{tpu_custom_call.1} parent=11 // pred_check_branch
          %322 = sbr.rel (%p320) target = $region44
        $region43: #{tpu_custom_call.1} parent=11 // pred_region
          %s324 = ssub.s32 4096, 4096
          %325 = vsyncadd [#allocation3], %s324
          %s326 = sshll.u32 [#allocation2], 4
          %s327 = int_to_ptr.vmem [resolvable:$true] %s326
          %332 = dma.hbm_to_vmem [thread:$0]  %s8, 4096, %s327, [#allocation3], 256, 256, 16
        $region44: #{tpu_custom_call.1} parent=11 // pred_fallthru
          _
        // Predicated region
        $region45: #{tpu_custom_call.1} parent=11 // pred_check
          %p333 = pneg %p237
        $region46: #{tpu_custom_call.1} parent=11 // pred_check_branch
          %335 = sbr.rel (%p333) target = $region48
        $region47: #{tpu_custom_call.1} parent=11 // pred_region
          _
        $region48: #{tpu_custom_call.1} parent=11 // pred_fallthru
          _
        // Predicated region
        $region49: #{tpu_custom_call.1} parent=11 // pred_check
          %p336 = pneg %p258
        $region50: #{tpu_custom_call.1} parent=11 // pred_check_branch
          %338 = sbr.rel (%p336) target = $region52
        $region51: #{tpu_custom_call.1} parent=11 // pred_region
          %s340 = ssub.s32 512, 512
          %341 = vsyncadd [#allocation6], %s340
          %s342 = sshll.u32 [#allocation5], 4
          %s343 = int_to_ptr.vmem [resolvable:$true] %s342
          %348 = dma.hbm_to_vmem [thread:$0]  %s10, 512, %s343, [#allocation6], 256, 256, 16
        $region52: #{tpu_custom_call.1} parent=11 // pred_fallthru
          _
      $region12: #{tpu_custom_call.1} parent=5 // pred_fallthru
        _
      %p349 = scmp.lt.s32.totalorder %s22, 2
      // Predicated region
      $region53: #{tpu_custom_call.1} parent=5 // pred_check
        %p350 = pneg %p349
      $region54: #{tpu_custom_call.1} parent=5 // pred_check_branch
        %352 = sbr.rel (%p350) target = $region56
      $region55: #{tpu_custom_call.1} parent=5 // pred_region
        // Predicated region
        $region57: #{tpu_custom_call.1} parent=55 // pred_check
          %p353 = pneg %p42
        $region58: #{tpu_custom_call.1} parent=55 // pred_check_branch
          %355 = sbr.rel (%p353) target = $region60
        $region59: #{tpu_custom_call.1} parent=55 // pred_region
          %s356 = smul.u32 2, %s22
          %p357 = scmp.lt.s32.totalorder %s356, 3
          %s358 = scalar_select %p357, %s356, 3
          %s359 = smul.addr %s358, 4
          %s360 = smul.addr %s359, 4
          %s361 = scalar_lea.vmem %s0, %s360
          %s362 = smul.u32 2, %s22
        $region60: #{tpu_custom_call.1} parent=55 // pred_fallthru
          _
      $region56: #{tpu_custom_call.1} parent=5 // pred_fallthru
        _
      %p363 = scmp.le.s32.totalorder 1, %s22
      %p364 = scmp.lt.s32.totalorder %s22, 3
      %p365 = pnand %p363, %p364
      %p366 = pneg %p365
      // Predicated region
      $region61: #{tpu_custom_call.1} parent=5 // pred_check
        _
      $region62: #{tpu_custom_call.1} parent=5 // pred_check_branch
        %368 = sbr.rel (%p365) target = $region64
      $region63: #{tpu_custom_call.1} parent=5 // pred_region
        %s369 = ssub.s32 %s22, 1
        // Predicated region
        $region65: #{tpu_custom_call.1} parent=63 // pred_check
          %p370 = pneg %p216
        $region66: #{tpu_custom_call.1} parent=63 // pred_check_branch
          %372 = sbr.rel (%p370) target = $region68
        $region67: #{tpu_custom_call.1} parent=63 // pred_region
          %373 = dma.done [#allocation3], 4096
        $region68: #{tpu_custom_call.1} parent=63 // pred_fallthru
          _
        // Predicated region
        $region69: #{tpu_custom_call.1} parent=63 // pred_check
          %p374 = pneg %p258
        $region70: #{tpu_custom_call.1} parent=63 // pred_check_branch
          %376 = sbr.rel (%p374) target = $region72
        $region71: #{tpu_custom_call.1} parent=63 // pred_region
          %377 = dma.done [#allocation6], 512
        $region72: #{tpu_custom_call.1} parent=63 // pred_fallthru
          _
        %s378 = smul.u32 2, %s27
        %p379 = scmp.lt.s32.totalorder %s378, 3
        %s380 = scalar_select %p379, %s378, 3
        %s381 = smul.addr %s380, 4
        %s382 = smul.addr %s381, 4
        %s383 = scalar_lea.vmem %s0, %s382
        %p384 = pneg %p48
        %p385 = pneg %p45
        %p386 = pneg %p69
        %p387 = pneg %p66
        %p388 = pneg %p90
        %p389 = pneg %p87
        %p390 = pneg %p111
        %p391 = pneg %p108
        %p392 = pneg %p132
        %p393 = pneg %p129
        %p394 = pneg %p153
        %p395 = pneg %p150
        %p396 = pneg %p174
        %p397 = pneg %p171
        %p398 = pneg %p195
        %p399 = pneg %p192
        %p400 = pneg %p216
        %p401 = pneg %p213
        %p402 = pneg %p237
        %p403 = pneg %p234
        %p404 = pneg %p258
        %p405 = pneg %p255
        %p406 = pneg %p284
        %p407 = pneg %p281
        %s408 = sand.u32 %s271, 1
        %s409 = scalar_lea.sflag [#allocation4], %s408
        %s410 = sand.u32 %s271, 1
        %s411 = smul.addr %s410, 32
        %s412 = scalar_lea.vmem [#allocation7], %s411
        %s413 = smul.u32 2, %s27
        %p414 = scmp.lt.s32.totalorder %s413, 3
        %s415 = scalar_select %p414, %s413, 3
        %s416 = smul.addr %s415, 4
        %s417 = smul.addr %s416, 4
        %s418 = scalar_lea.vmem %s0, %s417
        %s419 = smul.u32 2, %s27
        %s420 = smul.u32 2, %s27
        %v421 = vld [vmem:[%s418] sm:$0xff]
        %v422 = vld [vmem:[%s418 + $0x8] sm:$0xff]
        %v423 = vld [vmem:[%s418 + $0x10] sm:$0xff]
        %v424 = vld [vmem:[%s418 + $0x18] sm:$0xff]
        %v425 = vunpack.c.l.bf16 %v421
        %v426 = vunpack.c.h.bf16 %v421
        %v427 = vunpack.c.l.bf16 %v422
        %v428 = vunpack.c.h.bf16 %v422
        %v429 = vunpack.c.l.bf16 %v423
        %v430 = vunpack.c.h.bf16 %v423
        %v431 = vunpack.c.l.bf16 %v424
        %v432 = vunpack.c.h.bf16 %v424
        %v433 = vld [vmem:[%s1] sm:$0xff]
        %v434 = vld [vmem:[%s1 + $0x8] sm:$0xff]
        %v435 = vld [vmem:[%s1 + $0x10] sm:$0xff]
        %v436 = vld [vmem:[%s1 + $0x18] sm:$0xff]
        %v437 = vld [vmem:[%s1 + $0x20] sm:$0xff]
        %v438 = vld [vmem:[%s1 + $0x28] sm:$0xff]
        %v439 = vld [vmem:[%s1 + $0x30] sm:$0xff]
        %v440 = vld [vmem:[%s1 + $0x38] sm:$0xff]
        %v441 = vld [vmem:[%s1 + $0x40] sm:$0xff]
        %v442 = vld [vmem:[%s1 + $0x48] sm:$0xff]
        %v443 = vld [vmem:[%s1 + $0x50] sm:$0xff]
        %v444 = vld [vmem:[%s1 + $0x58] sm:$0xff]
        %v445 = vld [vmem:[%s1 + $0x60] sm:$0xff]
        %v446 = vld [vmem:[%s1 + $0x68] sm:$0xff]
        %v447 = vld [vmem:[%s1 + $0x70] sm:$0xff]
        %v448 = vld [vmem:[%s1 + $0x78] sm:$0xff]
        %v449 = vld [vmem:[%s1 + $0x80] sm:$0xff]
        %v450 = vld [vmem:[%s1 + $0x88] sm:$0xff]
        %v451 = vld [vmem:[%s1 + $0x90] sm:$0xff]
        %v452 = vld [vmem:[%s1 + $0x98] sm:$0xff]
        %v453 = vld [vmem:[%s1 + $0xa0] sm:$0xff]
        %v454 = vld [vmem:[%s1 + $0xa8] sm:$0xff]
        %v455 = vld [vmem:[%s1 + $0xb0] sm:$0xff]
        %v456 = vld [vmem:[%s1 + $0xb8] sm:$0xff]
        %v457 = vld [vmem:[%s1 + $0xc0] sm:$0xff]
        %v458 = vld [vmem:[%s1 + $0xc8] sm:$0xff]
        %v459 = vld [vmem:[%s1 + $0xd0] sm:$0xff]
        %v460 = vld [vmem:[%s1 + $0xd8] sm:$0xff]
        %v461 = vld [vmem:[%s1 + $0xe0] sm:$0xff]
        %v462 = vld [vmem:[%s1 + $0xe8] sm:$0xff]
        %v463 = vld [vmem:[%s1 + $0xf0] sm:$0xff]
        %v464 = vld [vmem:[%s1 + $0xf8] sm:$0xff]
        %465 = vmatprep.subr.mxu0 0.0
        %466 = vmatpush1.msra.mxu0 %v433
        %467 = vmatprep.subr.mxu0 0.0
        %468 = vmatpush1.msra.mxu0 %v434
        %469 = vmatprep.subr.mxu0 0.0
        %470 = vmatpush1.msra.mxu0 %v435
        %471 = vmatprep.subr.mxu0 0.0
        %472 = vmatpush1.msra.mxu0 %v436
        %473 = vmatprep.subr.mxu0 0.0
        %474 = vmatpush1.msra.mxu0 %v437
        %475 = vmatprep.subr.mxu0 0.0
        %476 = vmatpush1.msra.mxu0 %v438
        %477 = vmatprep.subr.mxu0 0.0
        %478 = vmatpush1.msra.mxu0 %v439
        %479 = vmatprep.subr.mxu0 0.0
        %480 = vmatpush1.msra.mxu0 %v440
        %481 = vmatprep.subr.mxu0 0.0
        %482 = vmatpush1.msra.mxu0 %v441
        %483 = vmatprep.subr.mxu0 0.0
        %484 = vmatpush1.msra.mxu0 %v442
        %485 = vmatprep.subr.mxu0 0.0
        %486 = vmatpush1.msra.mxu0 %v443
        %487 = vmatprep.subr.mxu0 0.0
        %488 = vmatpush1.msra.mxu0 %v444
        %489 = vmatprep.subr.mxu0 0.0
        %490 = vmatpush1.msra.mxu0 %v445
        %491 = vmatprep.subr.mxu0 0.0
        %492 = vmatpush1.msra.mxu0 %v446
        %493 = vmatprep.subr.mxu0 0.0
        %494 = vmatpush1.msra.mxu0 %v447
        %495 = vmatprep.subr.mxu0 0.0
        %496 = vmatpush1.msra.mxu0 %v448
        %497 = vmatprep.subr.mxu0 0.0
        %498 = vmatpush1.msra.mxu0 %v449
        %499 = vmatprep.subr.mxu0 0.0
        %500 = vmatpush1.msra.mxu0 %v450
        %501 = vmatprep.subr.mxu0 0.0
        %502 = vmatpush1.msra.mxu0 %v451
        %503 = vmatprep.subr.mxu0 0.0
        %504 = vmatpush1.msra.mxu0 %v452
        %505 = vmatprep.subr.mxu0 0.0
        %506 = vmatpush1.msra.mxu0 %v453
        %507 = vmatprep.subr.mxu0 0.0
        %508 = vmatpush1.msra.mxu0 %v454
        %509 = vmatprep.subr.mxu0 0.0
        %510 = vmatpush1.msra.mxu0 %v455
        %511 = vmatprep.subr.mxu0 0.0
        %512 = vmatpush1.msra.mxu0 %v456
        %513 = vmatprep.subr.mxu0 0.0
        %514 = vmatpush1.msra.mxu0 %v457
        %515 = vmatprep.subr.mxu0 0.0
        %516 = vmatpush1.msra.mxu0 %v458
        %517 = vmatprep.subr.mxu0 0.0
        %518 = vmatpush1.msra.mxu0 %v459
        %519 = vmatprep.subr.mxu0 0.0
        %520 = vmatpush1.msra.mxu0 %v460
        %521 = vmatprep.subr.mxu0 0.0
        %522 = vmatpush1.msra.mxu0 %v461
        %523 = vmatprep.subr.mxu0 0.0
        %524 = vmatpush1.msra.mxu0 %v462
        %525 = vmatprep.subr.mxu0 0.0
        %526 = vmatpush1.msra.mxu0 %v463
        %527 = vmatprep.subr.mxu0 0.0
        %528 = vmatpush1.msra.mxu0 %v464
        %529 = vmatprep.mubr.f32.mxu0 %v426
        %530 = vmatmul.mubr.f32.gmra.mrb[0].mxu0 %v425
        %v531 = vpop.f32.mrb[0].mxu0
        %v532 = vadd.f32 0.0, %v531
        %v533 = vpop.f32.mrb[0].mxu0
        %534 = vmatprep.mubr.f32.mxu0 %v428
        %535 = vmatmul.mubr.f32.gmra.mrb[0].mxu0 %v427
        %v536 = vpop.f32.mrb[0].mxu0
        %v537 = vadd.f32 0.0, %v536
        %v538 = vpop.f32.mrb[0].mxu0
        %539 = vmatprep.mubr.f32.mxu0 %v430
        %540 = vmatmul.mubr.f32.gmra.mrb[0].mxu0 %v429
        %v541 = vpop.f32.mrb[0].mxu0
        %v542 = vadd.f32 0.0, %v541
        %v543 = vpop.f32.mrb[0].mxu0
        %544 = vmatprep.mubr.f32.mxu0 %v432
        %545 = vmatmul.mubr.f32.gmra.mrb[0].mxu0 %v431
        %v546 = vpop.f32.mrb[0].mxu0
        %v547 = vadd.f32 0.0, %v546
        %v548 = vpop.f32.mrb[0].mxu0
        %549 = vdwg.mxu0
        %v550 = vld [vmem:[%s2] sm:$0xff]
        %v551 = vld [vmem:[%s2 + $0x8] sm:$0xff]
        %v552 = vld [vmem:[%s3] sm:$0x1]
        %v554 = vlaneseq
        %v555 = vshrl.u32 %v554, 7
        %v556 = vsub.s32 0, %v555
        %v557 = vrot.slane %v552, %v556
        %vm559 = vcmask 130048
        %v561 = vsel %vm559, %v532, 0
        %v564 = vsel %vm559, %v537, 0
        %v567 = vsel %vm559, %v542, 0
        %v570 = vsel %vm559, %v547, 0
        %572 = vmatprep.subr.mxu0 0.0
        %573 = vmatpush1.msra.mxu0 %v550
        %574 = vmatprep.subr.mxu0 0.0
        %575 = vmatpush1.msra.mxu0 %v551
        %576 = vmatprep.subr.mxu0 0.0
        %577 = vmatpush1.msra.mxu0 0.0
        %578 = vmatprep.subr.mxu0 0.0
        %579 = vmatpush1.msra.mxu0 0.0
        %580 = vmatprep.subr.mxu0 0.0
        %581 = vmatpush1.msra.mxu0 0.0
        %582 = vmatprep.subr.mxu0 0.0
        %583 = vmatpush1.msra.mxu0 0.0
        %584 = vmatprep.subr.mxu0 0.0
        %585 = vmatpush1.msra.mxu0 0.0
        %586 = vmatprep.subr.mxu0 0.0
        %587 = vmatpush1.msra.mxu0 0.0
        %588 = vmatprep.subr.mxu0 0.0
        %589 = vmatpush1.msra.mxu0 0.0
        %590 = vmatprep.subr.mxu0 0.0
        %591 = vmatpush1.msra.mxu0 0.0
        %592 = vmatprep.subr.mxu0 0.0
        %593 = vmatpush1.msra.mxu0 0.0
        %594 = vmatprep.subr.mxu0 0.0
        %595 = vmatpush1.msra.mxu0 0.0
        %596 = vmatprep.subr.mxu0 0.0
        %597 = vmatpush1.msra.mxu0 0.0
        %598 = vmatprep.subr.mxu0 0.0
        %599 = vmatpush1.msra.mxu0 0.0
        %600 = vmatprep.subr.mxu0 0.0
        %601 = vmatpush1.msra.mxu0 0.0
        %602 = vmatprep.subr.mxu0 0.0
        %603 = vmatpush1.msra.mxu0 0.0
        %604 = vmatprep.subr.mxu0 0.0
        %605 = vmatpush1.msra.mxu0 0.0
        %606 = vmatprep.subr.mxu0 0.0
        %607 = vmatpush1.msra.mxu0 0.0
        %608 = vmatprep.subr.mxu0 0.0
        %609 = vmatpush1.msra.mxu0 0.0
        %610 = vmatprep.subr.mxu0 0.0
        %611 = vmatpush1.msra.mxu0 0.0
        %612 = vmatprep.subr.mxu0 0.0
        %613 = vmatpush1.msra.mxu0 0.0
        %614 = vmatprep.subr.mxu0 0.0
        %615 = vmatpush1.msra.mxu0 0.0
        %616 = vmatprep.subr.mxu0 0.0
        %617 = vmatpush1.msra.mxu0 0.0
        %618 = vmatprep.subr.mxu0 0.0
        %619 = vmatpush1.msra.mxu0 0.0
        %620 = vmatprep.subr.mxu0 0.0
        %621 = vmatpush1.msra.mxu0 0.0
        %622 = vmatprep.subr.mxu0 0.0
        %623 = vmatpush1.msra.mxu0 0.0
        %624 = vmatprep.subr.mxu0 0.0
        %625 = vmatpush1.msra.mxu0 0.0
        %626 = vmatprep.subr.mxu0 0.0
        %627 = vmatpush1.msra.mxu0 0.0
        %628 = vmatprep.subr.mxu0 0.0
        %629 = vmatpush1.msra.mxu0 0.0
        %630 = vmatprep.subr.mxu0 0.0
        %631 = vmatpush1.msra.mxu0 0.0
        %632 = vmatprep.subr.mxu0 0.0
        %633 = vmatpush1.msra.mxu0 0.0
        %634 = vmatprep.subr.mxu0 0.0
        %635 = vmatpush1.msra.mxu0 0.0
        %636 = vmatprep.mubr.f32.mxu0 0.0
        %637 = vmatmul.mubr.f32.gmra.mrb[0].mxu0 %v561
        %v638 = vpop.f32.mrb[0].mxu0
        %v639 = vadd.f32 %v557, %v638
        %v640 = vpop.f32.mrb[0].mxu0
        %641 = vmatprep.mubr.f32.mxu0 0.0
        %642 = vmatmul.mubr.f32.gmra.mrb[0].mxu0 %v564
        %v643 = vpop.f32.mrb[0].mxu0
        %v644 = vadd.f32 %v557, %v643
        %v645 = vpop.f32.mrb[0].mxu0
        %646 = vmatprep.mubr.f32.mxu0 0.0
        %647 = vmatmul.mubr.f32.gmra.mrb[0].mxu0 %v567
        %v648 = vpop.f32.mrb[0].mxu0
        %v649 = vadd.f32 %v557, %v648
        %v650 = vpop.f32.mrb[0].mxu0
        %651 = vmatprep.mubr.f32.mxu0 0.0
        %652 = vmatmul.mubr.f32.gmra.mrb[0].mxu0 %v570
        %v653 = vpop.f32.mrb[0].mxu0
        %v654 = vadd.f32 %v557, %v653
        %v655 = vpop.f32.mrb[0].mxu0
        %656 = vdwg.mxu0
        %v657 = vadd.f32 %v639, 3.0
        %v658 = vadd.f32 %v644, 3.0
        %v659 = vadd.f32 %v649, 3.0
        %v660 = vadd.f32 %v654, 3.0
        %v661 = vmax.f32 %v657, 0.0
        %v662 = vmax.f32 %v658, 0.0
        %v663 = vmax.f32 %v659, 0.0
        %v664 = vmax.f32 %v660, 0.0
        %v665 = vmin.f32 %v661, 6.0
        %v666 = vmin.f32 %v662, 6.0
        %v667 = vmin.f32 %v663, 6.0
        %v668 = vmin.f32 %v664, 6.0
        %v669 = vmul.f32 %v639, %v665
        %v670 = vmul.f32 %v644, %v666
        %v671 = vmul.f32 %v649, %v667
        %v672 = vmul.f32 %v654, %v668
        %v673 = vmul.f32 %v669, 0.16666667
        %v674 = vmul.f32 %v670, 0.16666667
        %v675 = vmul.f32 %v671, 0.16666667
        %v676 = vmul.f32 %v672, 0.16666667
        %v677 = vld [vmem:[%s4] sm:$0xff]
        %v678 = vld [vmem:[%s5] sm:$0x1]
        %v680 = vlaneseq
        %v681 = vshrl.u32 %v680, 7
        %v682 = vsub.s32 0, %v681
        %v683 = vrot.slane %v678, %v682
        %vm685 = vcmask 64512
        %v687 = vsel %vm685, %v673, 0
        %v690 = vsel %vm685, %v674, 0
        %v693 = vsel %vm685, %v675, 0
        %v696 = vsel %vm685, %v676, 0
        %698 = vmatprep.subr.mxu0 0.0
        %699 = vmatpush1.msra.mxu0 %v677
        %700 = vmatprep.subr.mxu0 0.0
        %701 = vmatpush1.msra.mxu0 0.0
        %702 = vmatprep.subr.mxu0 0.0
        %703 = vmatpush1.msra.mxu0 0.0
        %704 = vmatprep.subr.mxu0 0.0
        %705 = vmatpush1.msra.mxu0 0.0
        %706 = vmatprep.subr.mxu0 0.0
        %707 = vmatpush1.msra.mxu0 0.0
        %708 = vmatprep.subr.mxu0 0.0
        %709 = vmatpush1.msra.mxu0 0.0
        %710 = vmatprep.subr.mxu0 0.0
        %711 = vmatpush1.msra.mxu0 0.0
        %712 = vmatprep.subr.mxu0 0.0
        %713 = vmatpush1.msra.mxu0 0.0
        %714 = vmatprep.subr.mxu0 0.0
        %715 = vmatpush1.msra.mxu0 0.0
        %716 = vmatprep.subr.mxu0 0.0
        %717 = vmatpush1.msra.mxu0 0.0
        %718 = vmatprep.subr.mxu0 0.0
        %719 = vmatpush1.msra.mxu0 0.0
        %720 = vmatprep.subr.mxu0 0.0
        %721 = vmatpush1.msra.mxu0 0.0
        %722 = vmatprep.subr.mxu0 0.0
        %723 = vmatpush1.msra.mxu0 0.0
        %724 = vmatprep.subr.mxu0 0.0
        %725 = vmatpush1.msra.mxu0 0.0
        %726 = vmatprep.subr.mxu0 0.0
        %727 = vmatpush1.msra.mxu0 0.0
        %728 = vmatprep.subr.mxu0 0.0
        %729 = vmatpush1.msra.mxu0 0.0
        %730 = vmatprep.subr.mxu0 0.0
        %731 = vmatpush1.msra.mxu0 0.0
        %732 = vmatprep.subr.mxu0 0.0
        %733 = vmatpush1.msra.mxu0 0.0
        %734 = vmatprep.subr.mxu0 0.0
        %735 = vmatpush1.msra.mxu0 0.0
        %736 = vmatprep.subr.mxu0 0.0
        %737 = vmatpush1.msra.mxu0 0.0
        %738 = vmatprep.subr.mxu0 0.0
        %739 = vmatpush1.msra.mxu0 0.0
        %740 = vmatprep.subr.mxu0 0.0
        %741 = vmatpush1.msra.mxu0 0.0
        %742 = vmatprep.subr.mxu0 0.0
        %743 = vmatpush1.msra.mxu0 0.0
        %744 = vmatprep.subr.mxu0 0.0
        %745 = vmatpush1.msra.mxu0 0.0
        %746 = vmatprep.subr.mxu0 0.0
        %747 = vmatpush1.msra.mxu0 0.0
        %748 = vmatprep.subr.mxu0 0.0
        %749 = vmatpush1.msra.mxu0 0.0
        %750 = vmatprep.subr.mxu0 0.0
        %751 = vmatpush1.msra.mxu0 0.0
        %752 = vmatprep.subr.mxu0 0.0
        %753 = vmatpush1.msra.mxu0 0.0
        %754 = vmatprep.subr.mxu0 0.0
        %755 = vmatpush1.msra.mxu0 0.0
        %756 = vmatprep.subr.mxu0 0.0
        %757 = vmatpush1.msra.mxu0 0.0
        %758 = vmatprep.subr.mxu0 0.0
        %759 = vmatpush1.msra.mxu0 0.0
        %760 = vmatprep.subr.mxu0 0.0
        %761 = vmatpush1.msra.mxu0 0.0
        %762 = vmatprep.mubr.f32.mxu0 0.0
        %763 = vmatmul.mubr.f32.gmra.mrb[0].mxu0 %v687
        %v764 = vpop.f32.mrb[0].mxu0
        %v765 = vadd.f32 %v683, %v764
        %v766 = vpop.f32.mrb[0].mxu0
        %767 = vmatprep.mubr.f32.mxu0 0.0
        %768 = vmatmul.mubr.f32.gmra.mrb[0].mxu0 %v690
        %v769 = vpop.f32.mrb[0].mxu0
        %v770 = vadd.f32 %v683, %v769
        %v771 = vpop.f32.mrb[0].mxu0
        %772 = vmatprep.mubr.f32.mxu0 0.0
        %773 = vmatmul.mubr.f32.gmra.mrb[0].mxu0 %v693
        %v774 = vpop.f32.mrb[0].mxu0
        %v775 = vadd.f32 %v683, %v774
        %v776 = vpop.f32.mrb[0].mxu0
        %777 = vmatprep.mubr.f32.mxu0 0.0
        %778 = vmatmul.mubr.f32.gmra.mrb[0].mxu0 %v696
        %v779 = vpop.f32.mrb[0].mxu0
        %v780 = vadd.f32 %v683, %v779
        %v781 = vpop.f32.mrb[0].mxu0
        %782 = vdwg.mxu0
        %v783 = vxor.u32 %v765, 2147483648
        %v784 = vxor.u32 %v770, 2147483648
        %v785 = vxor.u32 %v775, 2147483648
        %v786 = vxor.u32 %v780, 2147483648
        %v787 = vmul.f32 %v783, 1.442695
        %v788 = vpow.pop %v787
        %v789 = vmul.f32 %v784, 1.442695
        %v790 = vpow.pop %v789
        %v791 = vmul.f32 %v785, 1.442695
        %v792 = vpow.pop %v791
        %v793 = vmul.f32 %v786, 1.442695
        %v794 = vpow.pop %v793
        %v795 = vadd.f32 %v788, 1.0
        %v796 = vadd.f32 %v790, 1.0
        %v797 = vadd.f32 %v792, 1.0
        %v798 = vadd.f32 %v794, 1.0
        %v799 = vrcp.pop %v795
        %v800 = vmul.f32 1.0, %v799
        %v801 = vrcp.pop %v796
        %v802 = vmul.f32 1.0, %v801
        %v803 = vrcp.pop %v797
        %v804 = vmul.f32 1.0, %v803
        %v805 = vrcp.pop %v798
        %v806 = vmul.f32 1.0, %v805
        %v807 = vld [vmem:[#allocation5] sm:$0xff]
        %v808 = vld [vmem:[#allocation5 + $0x8] sm:$0xff]
        %v809 = vld [vmem:[#allocation5 + $0x10] sm:$0xff]
        %v810 = vld [vmem:[#allocation5 + $0x18] sm:$0xff]
        %v812 = vsel %vm559, %v800, 0
        %v815 = vsel %vm559, %v802, 0
        %v818 = vsel %vm559, %v804, 0
        %v821 = vsel %vm559, %v806, 0
        %823 = vmatprep.subr.mxu0 %v808
        %824 = vmatpush1.msra.mxu0 %v807
        %825 = vmatprep.subr.mxu0 %v810
        %826 = vmatpush1.msra.mxu0 %v809
        %827 = vmatprep.subr.mxu0 0.0
        %828 = vmatpush1.msra.mxu0 0.0
        %829 = vmatprep.subr.mxu0 0.0
        %830 = vmatpush1.msra.mxu0 0.0
        %831 = vmatprep.subr.mxu0 0.0
        %832 = vmatpush1.msra.mxu0 0.0
        %833 = vmatprep.subr.mxu0 0.0
        %834 = vmatpush1.msra.mxu0 0.0
        %835 = vmatprep.subr.mxu0 0.0
        %836 = vmatpush1.msra.mxu0 0.0
        %837 = vmatprep.subr.mxu0 0.0
        %838 = vmatpush1.msra.mxu0 0.0
        %839 = vmatprep.subr.mxu0 0.0
        %840 = vmatpush1.msra.mxu0 0.0
        %841 = vmatprep.subr.mxu0 0.0
        %842 = vmatpush1.msra.mxu0 0.0
        %843 = vmatprep.subr.mxu0 0.0
        %844 = vmatpush1.msra.mxu0 0.0
        %845 = vmatprep.subr.mxu0 0.0
        %846 = vmatpush1.msra.mxu0 0.0
        %847 = vmatprep.subr.mxu0 0.0
        %848 = vmatpush1.msra.mxu0 0.0
        %849 = vmatprep.subr.mxu0 0.0
        %850 = vmatpush1.msra.mxu0 0.0
        %851 = vmatprep.subr.mxu0 0.0
        %852 = vmatpush1.msra.mxu0 0.0
        %853 = vmatprep.subr.mxu0 0.0
        %854 = vmatpush1.msra.mxu0 0.0
        %855 = vmatprep.subr.mxu0 0.0
        %856 = vmatpush1.msra.mxu0 0.0
        %857 = vmatprep.subr.mxu0 0.0
        %858 = vmatpush1.msra.mxu0 0.0
        %859 = vmatprep.subr.mxu0 0.0
        %860 = vmatpush1.msra.mxu0 0.0
        %861 = vmatprep.subr.mxu0 0.0
        %862 = vmatpush1.msra.mxu0 0.0
        %863 = vmatprep.subr.mxu0 0.0
        %864 = vmatpush1.msra.mxu0 0.0
        %865 = vmatprep.subr.mxu0 0.0
        %866 = vmatpush1.msra.mxu0 0.0
        %867 = vmatprep.subr.mxu0 0.0
        %868 = vmatpush1.msra.mxu0 0.0
        %869 = vmatprep.subr.mxu0 0.0
        %870 = vmatpush1.msra.mxu0 0.0
        %871 = vmatprep.subr.mxu0 0.0
        %872 = vmatpush1.msra.mxu0 0.0
        %873 = vmatprep.subr.mxu0 0.0
        %874 = vmatpush1.msra.mxu0 0.0
        %875 = vmatprep.subr.mxu0 0.0
        %876 = vmatpush1.msra.mxu0 0.0
        %877 = vmatprep.subr.mxu0 0.0
        %878 = vmatpush1.msra.mxu0 0.0
        %879 = vmatprep.subr.mxu0 0.0
        %880 = vmatpush1.msra.mxu0 0.0
        %881 = vmatprep.subr.mxu0 0.0
        %882 = vmatpush1.msra.mxu0 0.0
        %883 = vmatprep.subr.mxu0 0.0
        %884 = vmatpush1.msra.mxu0 0.0
        %885 = vmatprep.subr.mxu0 0.0
        %886 = vmatpush1.msra.mxu0 0.0
        %887 = vmatprep.mubr.f32.mxu0 0.0
        %888 = vmatmul.mubr.f32.gmra.mrb[0].mxu0 %v812
        %v889 = vpop.f32.mrb[0].mxu0
        %v890 = vadd.f32 0.0, %v889
        %v891 = vpop.f32.mrb[0].mxu0
        %v892 = vadd.f32 0.0, %v891
        %893 = vmatprep.mubr.f32.mxu0 0.0
        %894 = vmatmul.mubr.f32.gmra.mrb[0].mxu0 %v815
        %v895 = vpop.f32.mrb[0].mxu0
        %v896 = vadd.f32 0.0, %v895
        %v897 = vpop.f32.mrb[0].mxu0
        %v898 = vadd.f32 0.0, %v897
        %899 = vmatprep.mubr.f32.mxu0 0.0
        %900 = vmatmul.mubr.f32.gmra.mrb[0].mxu0 %v818
        %v901 = vpop.f32.mrb[0].mxu0
        %v902 = vadd.f32 0.0, %v901
        %v903 = vpop.f32.mrb[0].mxu0
        %v904 = vadd.f32 0.0, %v903
        %905 = vmatprep.mubr.f32.mxu0 0.0
        %906 = vmatmul.mubr.f32.gmra.mrb[0].mxu0 %v821
        %v907 = vpop.f32.mrb[0].mxu0
        %v908 = vadd.f32 0.0, %v907
        %v909 = vpop.f32.mrb[0].mxu0
        %v910 = vadd.f32 0.0, %v909
        %911 = vdwg.mxu0
        %v912 = vadd.f32 %v425, %v427
        %v913 = vrot.slane %v912, 4
        %v914 = vadd.f32 %v912, %v913
        %v915 = vrot.slane %v914, 2
        %v916 = vadd.f32 %v914, %v915
        %v917 = vrot.slane %v916, 1
        %v918 = vadd.f32 %v916, %v917
        %v919 = vadd.f32 %v426, %v428
        %v920 = vrot.slane %v919, 4
        %v921 = vadd.f32 %v919, %v920
        %v922 = vrot.slane %v921, 2
        %v923 = vadd.f32 %v921, %v922
        %v924 = vrot.slane %v923, 1
        %v925 = vadd.f32 %v923, %v924
        %v926 = vadd.f32 %v429, %v431
        %v927 = vrot.slane %v926, 4
        %v928 = vadd.f32 %v926, %v927
        %v929 = vrot.slane %v928, 2
        %v930 = vadd.f32 %v928, %v929
        %v931 = vrot.slane %v930, 1
        %v932 = vadd.f32 %v930, %v931
        %v933 = vadd.f32 %v430, %v432
        %v934 = vrot.slane %v933, 4
        %v935 = vadd.f32 %v933, %v934
        %v936 = vrot.slane %v935, 2
        %v937 = vadd.f32 %v935, %v936
        %v938 = vrot.slane %v937, 1
        %v939 = vadd.f32 %v937, %v938
        %v940 = vld [vmem:[%s6] sm:$0xff]
        %v941 = vld [vmem:[%s6 + $0x8] sm:$0xff]
        %v942 = vld [vmem:[%s6 + $0x10] sm:$0xff]
        %v943 = vld [vmem:[%s6 + $0x18] sm:$0xff]
        %v944 = vld [vmem:[%s6 + $0x20] sm:$0xff]
        %v945 = vld [vmem:[%s6 + $0x28] sm:$0xff]
        %v946 = vld [vmem:[%s6 + $0x30] sm:$0xff]
        %v947 = vld [vmem:[%s6 + $0x38] sm:$0xff]
        %v948 = vld [vmem:[%s6 + $0x40] sm:$0xff]
        %v949 = vld [vmem:[%s6 + $0x48] sm:$0xff]
        %v950 = vld [vmem:[%s6 + $0x50] sm:$0xff]
        %v951 = vld [vmem:[%s6 + $0x58] sm:$0xff]
        %v952 = vld [vmem:[%s6 + $0x60] sm:$0xff]
        %v953 = vld [vmem:[%s6 + $0x68] sm:$0xff]
        %v954 = vld [vmem:[%s6 + $0x70] sm:$0xff]
        %v955 = vld [vmem:[%s6 + $0x78] sm:$0xff]
        %v956 = vld [vmem:[%s6 + $0x80] sm:$0xff]
        %v957 = vld [vmem:[%s6 + $0x88] sm:$0xff]
        %v958 = vld [vmem:[%s6 + $0x90] sm:$0xff]
        %v959 = vld [vmem:[%s6 + $0x98] sm:$0xff]
        %v960 = vld [vmem:[%s6 + $0xa0] sm:$0xff]
        %v961 = vld [vmem:[%s6 + $0xa8] sm:$0xff]
        %v962 = vld [vmem:[%s6 + $0xb0] sm:$0xff]
        %v963 = vld [vmem:[%s6 + $0xb8] sm:$0xff]
        %v964 = vld [vmem:[%s6 + $0xc0] sm:$0xff]
        %v965 = vld [vmem:[%s6 + $0xc8] sm:$0xff]
        %v966 = vld [vmem:[%s6 + $0xd0] sm:$0xff]
        %v967 = vld [vmem:[%s6 + $0xd8] sm:$0xff]
        %v968 = vld [vmem:[%s6 + $0xe0] sm:$0xff]
        %v969 = vld [vmem:[%s6 + $0xe8] sm:$0xff]
        %v970 = vld [vmem:[%s6 + $0xf0] sm:$0xff]
        %v971 = vld [vmem:[%s6 + $0xf8] sm:$0xff]
        %v972 = vld [vmem:[%s7] sm:$0x1]
        %v974 = vlaneseq
        %v975 = vshrl.u32 %v974, 7
        %v976 = vsub.s32 0, %v975
        %v977 = vrot.slane %v972, %v976
        %vm983 = vcmask 1041409
        %v984 = vsel %vm983, %v932, %v918
        %v985 = vsel %vm983, %v939, %v925
        %988 = vmatprep.subr.mxu0 0.0
        %989 = vmatpush1.msra.mxu0 %v940
        %990 = vmatprep.subr.mxu0 0.0
        %991 = vmatpush1.msra.mxu0 %v941
        %992 = vmatprep.subr.mxu0 0.0
        %993 = vmatpush1.msra.mxu0 %v942
        %994 = vmatprep.subr.mxu0 0.0
        %995 = vmatpush1.msra.mxu0 %v943
        %996 = vmatprep.subr.mxu0 0.0
        %997 = vmatpush1.msra.mxu0 %v944
        %998 = vmatprep.subr.mxu0 0.0
        %999 = vmatpush1.msra.mxu0 %v945
        %1000 = vmatprep.subr.mxu0 0.0
        %1001 = vmatpush1.msra.mxu0 %v946
        %1002 = vmatprep.subr.mxu0 0.0
        %1003 = vmatpush1.msra.mxu0 %v947
        %1004 = vmatprep.subr.mxu0 0.0
        %1005 = vmatpush1.msra.mxu0 %v948
        %1006 = vmatprep.subr.mxu0 0.0
        %1007 = vmatpush1.msra.mxu0 %v949
        %1008 = vmatprep.subr.mxu0 0.0
        %1009 = vmatpush1.msra.mxu0 %v950
        %1010 = vmatprep.subr.mxu0 0.0
        %1011 = vmatpush1.msra.mxu0 %v951
        %1012 = vmatprep.subr.mxu0 0.0
        %1013 = vmatpush1.msra.mxu0 %v952
        %1014 = vmatprep.subr.mxu0 0.0
        %1015 = vmatpush1.msra.mxu0 %v953
        %1016 = vmatprep.subr.mxu0 0.0
        %1017 = vmatpush1.msra.mxu0 %v954
        %1018 = vmatprep.subr.mxu0 0.0
        %1019 = vmatpush1.msra.mxu0 %v955
        %1020 = vmatprep.subr.mxu0 0.0
        %1021 = vmatpush1.msra.mxu0 %v956
        %1022 = vmatprep.subr.mxu0 0.0
        %1023 = vmatpush1.msra.mxu0 %v957
        %1024 = vmatprep.subr.mxu0 0.0
        %1025 = vmatpush1.msra.mxu0 %v958
        %1026 = vmatprep.subr.mxu0 0.0
        %1027 = vmatpush1.msra.mxu0 %v959
        %1028 = vmatprep.subr.mxu0 0.0
        %1029 = vmatpush1.msra.mxu0 %v960
        %1030 = vmatprep.subr.mxu0 0.0
        %1031 = vmatpush1.msra.mxu0 %v961
        %1032 = vmatprep.subr.mxu0 0.0
        %1033 = vmatpush1.msra.mxu0 %v962
        %1034 = vmatprep.subr.mxu0 0.0
        %1035 = vmatpush1.msra.mxu0 %v963
        %1036 = vmatprep.subr.mxu0 0.0
        %1037 = vmatpush1.msra.mxu0 %v964
        %1038 = vmatprep.subr.mxu0 0.0
        %1039 = vmatpush1.msra.mxu0 %v965
        %1040 = vmatprep.subr.mxu0 0.0
        %1041 = vmatpush1.msra.mxu0 %v966
        %1042 = vmatprep.subr.mxu0 0.0
        %1043 = vmatpush1.msra.mxu0 %v967
        %1044 = vmatprep.subr.mxu0 0.0
        %1045 = vmatpush1.msra.mxu0 %v968
        %1046 = vmatprep.subr.mxu0 0.0
        %1047 = vmatpush1.msra.mxu0 %v969
        %1048 = vmatprep.subr.mxu0 0.0
        %1049 = vmatpush1.msra.mxu0 %v970
        %1050 = vmatprep.subr.mxu0 0.0
        %1051 = vmatpush1.msra.mxu0 %v971
        %1052 = vmatprep.mubr.f32.mxu0 %v985
        %1053 = vmatmul.mubr.f32.gmra.mrb[0].mxu0 %v984
        %v1054 = vpop.f32.mrb[0].mxu0
        %v1055 = vadd.f32 %v977, %v1054
        %v1056 = vpop.f32.mrb[0].mxu0
        %1057 = vdwg.mxu0
        %v1058 = vadd.f32 %v1055, 3.0
        %v1059 = vmax.f32 %v1058, 0.0
        %v1060 = vmin.f32 %v1059, 6.0
        %v1061 = vmul.f32 %v1055, %v1060
        %v1062 = vmul.f32 %v1061, 0.16666667
        %v1063 = vld [vmem:[#allocation2] sm:$0xff]
        %v1064 = vld [vmem:[#allocation2 + $0x8] sm:$0xff]
        %v1065 = vld [vmem:[#allocation2 + $0x10] sm:$0xff]
        %v1066 = vld [vmem:[#allocation2 + $0x18] sm:$0xff]
        %v1067 = vld [vmem:[#allocation2 + $0x20] sm:$0xff]
        %v1068 = vld [vmem:[#allocation2 + $0x28] sm:$0xff]
        %v1069 = vld [vmem:[#allocation2 + $0x30] sm:$0xff]
        %v1070 = vld [vmem:[#allocation2 + $0x38] sm:$0xff]
        %v1071 = vld [vmem:[#allocation2 + $0x40] sm:$0xff]
        %v1072 = vld [vmem:[#allocation2 + $0x48] sm:$0xff]
        %v1073 = vld [vmem:[#allocation2 + $0x50] sm:$0xff]
        %v1074 = vld [vmem:[#allocation2 + $0x58] sm:$0xff]
        %v1075 = vld [vmem:[#allocation2 + $0x60] sm:$0xff]
        %v1076 = vld [vmem:[#allocation2 + $0x68] sm:$0xff]
        %v1077 = vld [vmem:[#allocation2 + $0x70] sm:$0xff]
        %v1078 = vld [vmem:[#allocation2 + $0x78] sm:$0xff]
        %v1079 = vld [vmem:[#allocation2 + $0x80] sm:$0xff]
        %v1080 = vld [vmem:[#allocation2 + $0x88] sm:$0xff]
        %v1081 = vld [vmem:[#allocation2 + $0x90] sm:$0xff]
        %v1082 = vld [vmem:[#allocation2 + $0x98] sm:$0xff]
        %v1083 = vld [vmem:[#allocation2 + $0xa0] sm:$0xff]
        %v1084 = vld [vmem:[#allocation2 + $0xa8] sm:$0xff]
        %v1085 = vld [vmem:[#allocation2 + $0xb0] sm:$0xff]
        %v1086 = vld [vmem:[#allocation2 + $0xb8] sm:$0xff]
        %v1087 = vld [vmem:[#allocation2 + $0xc0] sm:$0xff]
        %v1088 = vld [vmem:[#allocation2 + $0xc8] sm:$0xff]
        %v1089 = vld [vmem:[#allocation2 + $0xd0] sm:$0xff]
        %v1090 = vld [vmem:[#allocation2 + $0xd8] sm:$0xff]
        %v1091 = vld [vmem:[#allocation2 + $0xe0] sm:$0xff]
        %v1092 = vld [vmem:[#allocation2 + $0xe8] sm:$0xff]
        %v1093 = vld [vmem:[#allocation2 + $0xf0] sm:$0xff]
        %v1094 = vld [vmem:[#allocation2 + $0xf8] sm:$0xff]
        %v1095 = vld [vmem:[%s9] sm:$0x3]
        %v1097 = vlaneseq
        %v1098 = vshrl.u32 %v1097, 7
        %v1099 = vsub.s32 0, %v1098
        %v1100 = vrot.slane %v1095, %v1099
        %v1101 = vlaneseq
        %v1102 = vshrl.u32 %v1101, 7
        %v1103 = vsub.s32 1, %v1102
        %v1104 = vrot.slane %v1095, %v1103
        %1107 = vmatprep.subr.mxu0 %v1064
        %1108 = vmatpush1.msra.mxu0 %v1063
        %1109 = vmatprep.subr.mxu0 %v1066
        %1110 = vmatpush1.msra.mxu0 %v1065
        %1111 = vmatprep.subr.mxu0 %v1068
        %1112 = vmatpush1.msra.mxu0 %v1067
        %1113 = vmatprep.subr.mxu0 %v1070
        %1114 = vmatpush1.msra.mxu0 %v1069
        %1115 = vmatprep.subr.mxu0 %v1072
        %1116 = vmatpush1.msra.mxu0 %v1071
        %1117 = vmatprep.subr.mxu0 %v1074
        %1118 = vmatpush1.msra.mxu0 %v1073
        %1119 = vmatprep.subr.mxu0 %v1076
        %1120 = vmatpush1.msra.mxu0 %v1075
        %1121 = vmatprep.subr.mxu0 %v1078
        %1122 = vmatpush1.msra.mxu0 %v1077
        %1123 = vmatprep.subr.mxu0 %v1080
        %1124 = vmatpush1.msra.mxu0 %v1079
        %1125 = vmatprep.subr.mxu0 %v1082
        %1126 = vmatpush1.msra.mxu0 %v1081
        %1127 = vmatprep.subr.mxu0 %v1084
        %1128 = vmatpush1.msra.mxu0 %v1083
        %1129 = vmatprep.subr.mxu0 %v1086
        %1130 = vmatpush1.msra.mxu0 %v1085
        %1131 = vmatprep.subr.mxu0 %v1088
        %1132 = vmatpush1.msra.mxu0 %v1087
        %1133 = vmatprep.subr.mxu0 %v1090
        %1134 = vmatpush1.msra.mxu0 %v1089
        %1135 = vmatprep.subr.mxu0 %v1092
        %1136 = vmatpush1.msra.mxu0 %v1091
        %1137 = vmatprep.subr.mxu0 %v1094
        %1138 = vmatpush1.msra.mxu0 %v1093
        %1139 = vmatprep.subr.mxu0 0.0
        %1140 = vmatpush1.msra.mxu0 0.0
        %1141 = vmatprep.subr.mxu0 0.0
        %1142 = vmatpush1.msra.mxu0 0.0
        %1143 = vmatprep.subr.mxu0 0.0
        %1144 = vmatpush1.msra.mxu0 0.0
        %1145 = vmatprep.subr.mxu0 0.0
        %1146 = vmatpush1.msra.mxu0 0.0
        %1147 = vmatprep.subr.mxu0 0.0
        %1148 = vmatpush1.msra.mxu0 0.0
        %1149 = vmatprep.subr.mxu0 0.0
        %1150 = vmatpush1.msra.mxu0 0.0
        %1151 = vmatprep.subr.mxu0 0.0
        %1152 = vmatpush1.msra.mxu0 0.0
        %1153 = vmatprep.subr.mxu0 0.0
        %1154 = vmatpush1.msra.mxu0 0.0
        %1155 = vmatprep.subr.mxu0 0.0
        %1156 = vmatpush1.msra.mxu0 0.0
        %1157 = vmatprep.subr.mxu0 0.0
        %1158 = vmatpush1.msra.mxu0 0.0
        %1159 = vmatprep.subr.mxu0 0.0
        %1160 = vmatpush1.msra.mxu0 0.0
        %1161 = vmatprep.subr.mxu0 0.0
        %1162 = vmatpush1.msra.mxu0 0.0
        %1163 = vmatprep.subr.mxu0 0.0
        %1164 = vmatpush1.msra.mxu0 0.0
        %1165 = vmatprep.subr.mxu0 0.0
        %1166 = vmatpush1.msra.mxu0 0.0
        %1167 = vmatprep.subr.mxu0 0.0
        %1168 = vmatpush1.msra.mxu0 0.0
        %1169 = vmatprep.subr.mxu0 0.0
        %1170 = vmatpush1.msra.mxu0 0.0
        %1171 = vmatprep.mubr.f32.mxu0 0.0
        %1172 = vmatmul.mubr.f32.gmra.mrb[0].mxu0 %v1062
        %v1173 = vpop.f32.mrb[0].mxu0
        %v1174 = vadd.f32 %v1100, %v1173
        %v1175 = vpop.f32.mrb[0].mxu0
        %v1176 = vadd.f32 %v1104, %v1175
        %1177 = vdwg.mxu0
        %v1178 = vxor.u32 %v1174, 2147483648
        %v1179 = vxor.u32 %v1176, 2147483648
        %v1180 = vmul.f32 %v1178, 1.442695
        %v1181 = vpow.pop %v1180
        %v1182 = vmul.f32 %v1179, 1.442695
        %v1183 = vpow.pop %v1182
        %v1184 = vadd.f32 %v1181, 1.0
        %v1185 = vadd.f32 %v1183, 1.0
        %v1186 = vrcp.pop %v1184
        %v1187 = vmul.f32 1.0, %v1186
        %v1188 = vrcp.pop %v1185
        %v1189 = vmul.f32 1.0, %v1188
        %v1192 = vcombine.low %v1187, %v1189
        %v1194 = vunpack.c.l.s4 1966171168
        %v1195 = vunpack.c.0.s8 %v1194
        %v1196 = vlaneseq
        %v1197 = vshrl.u32 %v1196, 7
        %v1198 = vsub.s32 %v1195, %v1197
        %v1199 = vrot.slane %v1192, %v1198
        %v1200 = vcombine.high %v1199, %v1199
        %v1202 = vunpack.c.l.s4 1966171168
        %v1203 = vunpack.c.0.s8 %v1202
        %v1204 = vlaneseq
        %v1205 = vshrl.u32 %v1204, 7
        %v1206 = vsub.s32 %v1203, %v1205
        %v1207 = vrot.slane %v1199, %v1206
        %v1209 = vunpack.c.l.s4 1966171168
        %v1210 = vunpack.c.0.s8 %v1209
        %v1211 = vlaneseq
        %v1212 = vshrl.u32 %v1211, 7
        %v1213 = vsub.s32 %v1210, %v1212
        %v1214 = vrot.slane %v1200, %v1213
        %v1215 = vlaneseq
        %v1216 = vshrl.u32 %v1215, 7
        %v1217 = vsub.s32 0, %v1216
        %v1218 = vrot.slane %v1207, %v1217
        %v1219 = vlaneseq
        %v1220 = vshrl.u32 %v1219, 7
        %v1221 = vsub.s32 1, %v1220
        %v1222 = vrot.slane %v1207, %v1221
        %v1223 = vlaneseq
        %v1224 = vshrl.u32 %v1223, 7
        %v1225 = vsub.s32 0, %v1224
        %v1226 = vrot.slane %v1214, %v1225
        %v1227 = vlaneseq
        %v1228 = vshrl.u32 %v1227, 7
        %v1229 = vsub.s32 1, %v1228
        %v1230 = vrot.slane %v1214, %v1229
        %v1235 = vmul.f32 %v425, %v1218
        %v1236 = vmul.f32 %v426, %v1222
        %v1237 = vmul.f32 %v427, %v1218
        %v1238 = vmul.f32 %v428, %v1222
        %v1239 = vmul.f32 %v429, %v1226
        %v1240 = vmul.f32 %v430, %v1230
        %v1241 = vmul.f32 %v431, %v1226
        %v1242 = vmul.f32 %v432, %v1230
        %v1243 = vmul.f32 %v1235, %v890
        %v1244 = vmul.f32 %v1236, %v892
        %v1245 = vmul.f32 %v1237, %v896
        %v1246 = vmul.f32 %v1238, %v898
        %v1247 = vmul.f32 %v1239, %v902
        %v1248 = vmul.f32 %v1240, %v904
        %v1249 = vmul.f32 %v1241, %v908
        %v1250 = vmul.f32 %v1242, %v910
        %v1251 = vpack.c.bf16 %v1245, %v1243
        %v1252 = vpack.c.bf16 %v1246, %v1244
        %v1253 = vpack.c.bf16 %v1249, %v1247
        %v1254 = vpack.c.bf16 %v1250, %v1248
        %v1259 = vunpack.c.l.b16 %v1251
        %v1260 = vunpack.c.l.b16 %v1252
        %v1261 = vunpack.c.h.b16 %v1251
        %v1262 = vunpack.c.h.b16 %v1252
        %v1263 = vunpack.c.l.b16 %v1253
        %v1264 = vunpack.c.l.b16 %v1254
        %v1265 = vunpack.c.h.b16 %v1253
        %v1266 = vunpack.c.h.b16 %v1254
        %v1267 = vpack.c.b16 %v1260, %v1259
        %v1268 = vpack.c.b16 %v1262, %v1261
        %v1269 = vpack.c.b16 %v1264, %v1263
        %v1270 = vpack.c.b16 %v1266, %v1265
        %1275 = vst [vmem:[%s412] sm:$0xff] %v1267
        %1276 = vst [vmem:[%s412 + $0x8] sm:$0xff] %v1268
        %1277 = vst [vmem:[%s412 + $0x10] sm:$0xff] %v1269
        %1278 = vst [vmem:[%s412 + $0x18] sm:$0xff] %v1270
        %s1279 = sand.u32 %s271, 1
        %s1280 = scalar_lea.sflag [#allocation4], %s1279
        %s1281 = sand.u32 %s271, 1
        %s1282 = smul.addr %s1281, 32
        %s1283 = scalar_lea.vmem [#allocation7], %s1282
        // Predicated region
        $region73: #{tpu_custom_call.1} parent=63 // pred_check
          %p1284 = pneg %p281
        $region74: #{tpu_custom_call.1} parent=63 // pred_check_branch
          %1286 = sbr.rel (%p1284) target = $region76
        $region75: #{tpu_custom_call.1} parent=63 // pred_region
          %s1287 = smul.u32 2, %s27
          %s1289 = ssub.s32 512, 512
          %1290 = vsyncadd %s1280, %s1289
          %s1291 = smul.addr %s1287, 4
          %s1292 = smul.addr %s1291, 64
          %s1293 = scalar_lea.hbm %s11, %s1292
          %s1294 = sshll.u32 %s1283, 4
          %s1295 = int_to_ptr.vmem [resolvable:$true] %s1294
          %1300 = dma.vmem_to_hbm [thread:$0]  %s1295, 512, %s1293, %s1280, 128, 128, 8
        $region76: #{tpu_custom_call.1} parent=63 // pred_fallthru
          _
      $region64: #{tpu_custom_call.1} parent=5 // pred_fallthru
        _
      %p1301 = scmp.le.s32.totalorder 2, %s22
      // Predicated region
      $region77: #{tpu_custom_call.1} parent=5 // pred_check
        %p1302 = pneg %p1301
      $region78: #{tpu_custom_call.1} parent=5 // pred_check_branch
        %1304 = sbr.rel (%p1302) target = $region80
      $region79: #{tpu_custom_call.1} parent=5 // pred_region
        %s1305 = ssub.s32 %s22, 2
        // Predicated region
        $region81: #{tpu_custom_call.1} parent=79 // pred_check
          %p1306 = pneg %p287
        $region82: #{tpu_custom_call.1} parent=79 // pred_check_branch
          %1308 = sbr.rel (%p1306) target = $region84
        $region83: #{tpu_custom_call.1} parent=79 // pred_region
          %s1309 = sand.u32 %s272, 1
          %s1310 = scalar_lea.sflag [#allocation4], %s1309
          %s1311 = sand.u32 %s272, 1
          %s1312 = smul.addr %s1311, 32
          %s1313 = scalar_lea.vmem [#allocation7], %s1312
          %1314 = dma.done %s1310, 512
        $region84: #{tpu_custom_call.1} parent=79 // pred_fallthru
          _
      $region80: #{tpu_custom_call.1} parent=5 // pred_fallthru
        _
    $region6: #{tpu_custom_call.1} parent=1 // loop_footer
      %s26 = sadd.s32 1, %s22
    $region7: #{tpu_custom_call.1} parent=1 // loop_footer_branch
      %21 = sbr.rel target = $region3
    $region8: #{tpu_custom_call.1} parent=1 // loop_exit
      _
    %1315 = vsyncpa [#allocation3], 1
    %s1316 = scalar_lea.sflag [#allocation3], 1
    %1317 = vsyncpa %s1316, 1
    %1318 = vsyncpa [#allocation6], 1
    %1319 = vsyncpa [#allocation4], 1
    %s1320 = scalar_lea.sflag [#allocation4], 1
    %1321 = vsyncpa %s1320, 1

</llo_original>
